<compile_context>
chip_gen: v7x
topology: tpu7x:2x2x1
jax: 0.10.0
libtpu: 0.0.40
codegen_flags: <defaults>
</compile_context>

<pallas_src>
import jax
import jax.numpy as jnp
import numpy as np
from jax import lax
from jax.experimental import pallas as pl
from jax.experimental.pallas import tpu as pltpu

NEG_SLOPE = 0.01   # F.leaky_relu default negative_slope
SUBLANE = 8        # f32 sublane tile granule


def _leaky_relu(x):
    return jnp.where(x > 0, x, NEG_SLOPE * x)


def _round_up(x, m):
    return (x + m - 1) // m * m


def _pick_batch_block(n):
    # Up to 8 images per grid step, but keep >= 2 grid steps when possible
    # (v7x megacore sharding) and require nb | n so every block is full.
    for nb in (8, 4, 2, 1):
        if n % nb == 0 and n // nb >= 2:
            return nb
    return n


def residual_block(x_nchw, w1, b1, w2, b2, *, matmul_dtype=jnp.float32):
    """Fused ResidualBlock forward.

    x_nchw: (N, C, H, W) f32.  w1, w2: (C, C, 3, 3) PyTorch OIHW.  b*: (C,).
    """
    N, C, H, W = x_nchw.shape
    HW = H * W
    Cp = _round_up(C, SUBLANE)
    nb = _pick_batch_block(N)

    # Kernel layout: channels (sublane-padded to 8) x flattened spatial lanes.
    x = x_nchw.astype(jnp.float32).reshape(N, C, HW)
    xp = jnp.pad(x, ((0, 0), (0, Cp - C), (0, 0)))                # (N, Cp, HW)

    def pack_w(w):
        # w_k[co, ci] = w[co, ci, ky, kx], k = ky*3 + kx  ->  (9, Cp, Cp)
        wk = jnp.transpose(w.astype(jnp.float32), (2, 3, 0, 1)).reshape(9, C, C)
        wk = jnp.pad(wk, ((0, 0), (0, Cp - C), (0, Cp - C)))
        return wk.astype(matmul_dtype)

    w1k = pack_w(w1)
    w2k = pack_w(w2)
    b1p = jnp.pad(b1.astype(jnp.float32), (0, Cp - C)).reshape(Cp, 1)
    b2p = jnp.pad(b2.astype(jnp.float32), (0, Cp - C)).reshape(Cp, 1)

    # Per-tap boundary masks over the flattened spatial axis (host-built;
    # avoids in-kernel lane div/mod), tiled over the Cp sublanes.
    masks_np = np.zeros((9, Cp, HW), np.float32)
    for k in range(9):
        dy, dx = k // 3 - 1, k % 3 - 1
        m = np.zeros((H, W), np.float32)
        m[max(0, -dy):min(H, H - dy), max(0, -dx):min(W, W - dx)] = 1.0
        masks_np[k] = m.reshape(1, HW)
    masks = jnp.asarray(masks_np)

    def conv3x3(v, w_ref, m_ref):
        """3x3 SAME conv as 9 accumulated MXU matmuls; taps via XLU rolls."""
        acc = None
        for k in range(9):
            dy, dx = k // 3 - 1, k % 3 - 1
            shift = dy * W + dx
            rolled = v if shift == 0 else pltpu.roll(v, (-shift) % HW, axis=1)
            tap = jnp.where(m_ref[k] > 0.5, rolled, 0.0).astype(matmul_dtype)
            d = jnp.dot(w_ref[k], tap, preferred_element_type=jnp.float32)
            acc = d if acc is None else acc + d
        return acc                                                # (Cp, HW) f32

    def kernel(x_ref, w1_ref, b1_ref, w2_ref, b2_ref, m_ref, o_ref):
        b1c = b1_ref[...]
        b2c = b2_ref[...]
        for b in range(nb):                 # static unroll over the batch block
            xv = x_ref[b]                                         # (Cp, HW)
            y = _leaky_relu(conv3x3(xv, w1_ref, m_ref) + b1c)
            z = conv3x3(y, w2_ref, m_ref) + b2c + xv              # + residual
            o_ref[b] = _leaky_relu(z)[:C, :]                      # unpadded write

    out = pl.pallas_call(
        kernel,
        out_shape=jax.ShapeDtypeStruct((N, C, HW), jnp.float32),
        grid_spec=pltpu.PrefetchScalarGridSpec(
            num_scalar_prefetch=0,
            grid=(N // nb,),
            in_specs=[
                pl.BlockSpec((nb, Cp, HW), lambda i: (i, 0, 0)),   # x (+residual)
                pl.BlockSpec((9, Cp, Cp), lambda i: (0, 0, 0)),    # w1 taps
                pl.BlockSpec((Cp, 1), lambda i: (0, 0)),           # b1
                pl.BlockSpec((9, Cp, Cp), lambda i: (0, 0, 0)),    # w2 taps
                pl.BlockSpec((Cp, 1), lambda i: (0, 0)),           # b2
                pl.BlockSpec((9, Cp, HW), lambda i: (0, 0, 0)),    # masks
            ],
            out_specs=pl.BlockSpec((nb, C, HW), lambda i: (i, 0, 0)),
        ),
        compiler_params=pltpu.CompilerParams(
            dimension_semantics=("parallel",),
            vmem_limit_bytes=32 * 1024 * 1024,
        ),
    )(xp, w1k, b1p, w2k, b2p, masks)

    return out.reshape(N, C, H, W)


def _reference(x, w1, b1, w2, b2):
    """Pure-JAX reference matching F.conv2d(padding=1) semantics (OIHW)."""
    C = x.shape[1]
    dn = lax.conv_dimension_numbers(x.shape, w1.shape, ("NCHW", "OIHW", "NCHW"))
    y = lax.conv_general_dilated(x, w1, (1, 1), "SAME",
                                 dimension_numbers=dn) + b1.reshape(1, C, 1, 1)
    y = jnp.where(y > 0, y, NEG_SLOPE * y)
    z = lax.conv_general_dilated(y, w2, (1, 1), "SAME",
                                 dimension_numbers=dn) + b2.reshape(1, C, 1, 1)
    z = z + x
    return jnp.where(z > 0, z, NEG_SLOPE * z)


if __name__ == "__main__":
    N, C, H, W = 2, 4, 16, 16
    key = jax.random.PRNGKey(0)
    kx, kw1, kb1, kw2, kb2 = jax.random.split(key, 5)

    # Deterministic Conv2d-style init: uniform(-1/sqrt(fan_in), 1/sqrt(fan_in)).
    fan_in = C * 3 * 3
    bound = 1.0 / (fan_in ** 0.5)
    x = jax.random.normal(kx, (N, C, H, W), dtype=jnp.float32)
    w1 = jax.random.uniform(kw1, (C, C, 3, 3), jnp.float32, -bound, bound)
    b1 = jax.random.uniform(kb1, (C,), jnp.float32, -bound, bound)
    w2 = jax.random.uniform(kw2, (C, C, 3, 3), jnp.float32, -bound, bound)
    b2 = jax.random.uniform(kb2, (C,), jnp.float32, -bound, bound)

    out = jax.block_until_ready(residual_block(x, w1, b1, w2, b2))
    ref = jax.block_until_ready(_reference(x, w1, b1, w2, b2))

    assert out.shape == (N, C, H, W), out.shape
    err = float(jnp.max(jnp.abs(out - ref)))
    assert jnp.allclose(out, ref, atol=1e-4, rtol=1e-4), err
    print("KERNEL_OK")
</pallas_src>

<mosaic_0001>
module attributes {stable_mosaic.version = 11 : i64} {
  func.func @kernel(%arg0: i32, %arg1: memref<1x8x256xf32, #tpu.memory_space<vmem>>, %arg2: memref<9x8x8xf32, #tpu.memory_space<vmem>>, %arg3: memref<8x1xf32, #tpu.memory_space<vmem>>, %arg4: memref<9x8x8xf32, #tpu.memory_space<vmem>>, %arg5: memref<8x1xf32, #tpu.memory_space<vmem>>, %arg6: memref<9x8x256xf32, #tpu.memory_space<vmem>>, %arg7: memref<1x4x256xf32, #tpu.memory_space<vmem>>) attributes {dimension_semantics = [#tpu.dimension_semantics<parallel>], iteration_bounds = array<i64: 2>, scalar_prefetch = 0 : i64, scratch_operands = 0 : i64, tpu.core_type = #tpu.core_type<tc>, window_params = [{transform_indices = @transform_0, window_bounds = array<i64: 1, 8, 256>}, {pipeline_mode = #tpu.pipeline_mode<synchronous>, transform_indices = @transform_1, window_bounds = array<i64: 9, 8, 8>}, {pipeline_mode = #tpu.pipeline_mode<synchronous>, transform_indices = @transform_2, window_bounds = array<i64: 8, 1>}, {pipeline_mode = #tpu.pipeline_mode<synchronous>, transform_indices = @transform_3, window_bounds = array<i64: 9, 8, 8>}, {pipeline_mode = #tpu.pipeline_mode<synchronous>, transform_indices = @transform_4, window_bounds = array<i64: 8, 1>}, {pipeline_mode = #tpu.pipeline_mode<synchronous>, transform_indices = @transform_5, window_bounds = array<i64: 9, 8, 256>}, {transform_indices = @transform_6, window_bounds = array<i64: 1, 4, 256>}]} {
    %c0 = arith.constant 0 : index
    %c0_0 = arith.constant 0 : index
    %0 = vector.load %arg3[%c0, %c0_0] : memref<8x1xf32, #tpu.memory_space<vmem>>, vector<8x1xf32>
    %c0_1 = arith.constant 0 : index
    %c0_2 = arith.constant 0 : index
    %1 = vector.load %arg5[%c0_1, %c0_2] : memref<8x1xf32, #tpu.memory_space<vmem>>, vector<8x1xf32>
    %c0_3 = arith.constant 0 : index
    %c0_4 = arith.constant 0 : index
    %c0_5 = arith.constant 0 : index
    %2 = vector.load %arg1[%c0_3, %c0_4, %c0_5] : memref<1x8x256xf32, #tpu.memory_space<vmem>>, vector<1x8x256xf32>
    %3 = vector.shape_cast %2 : vector<1x8x256xf32> to vector<8x256xf32>
    %c17_i32 = arith.constant 17 : i32
    %4 = tpu.dynamic_rotate %3 by %c17_i32 dim 1 : vector<8x256xf32>, i32 -> vector<8x256xf32>
    %c0_6 = arith.constant 0 : index
    %c0_7 = arith.constant 0 : index
    %c0_8 = arith.constant 0 : index
    %5 = vector.load %arg6[%c0_6, %c0_7, %c0_8] : memref<9x8x256xf32, #tpu.memory_space<vmem>>, vector<1x8x256xf32>
    %6 = vector.shape_cast %5 : vector<1x8x256xf32> to vector<8x256xf32>
    %cst = arith.constant 5.000000e-01 : f32
    %7 = vector.broadcast %cst : f32 to vector<8x256xf32>
    %8 = arith.cmpf ogt, %6, %7 : vector<8x256xf32>
    %cst_9 = arith.constant 0.000000e+00 : f32
    %9 = vector.broadcast %cst_9 : f32 to vector<8x256xf32>
    %10 = arith.select %8, %4, %9 : vector<8x256xi1>, vector<8x256xf32>
    %c0_10 = arith.constant 0 : index
    %c0_11 = arith.constant 0 : index
    %c0_12 = arith.constant 0 : index
    %11 = vector.load %arg2[%c0_10, %c0_11, %c0_12] : memref<9x8x8xf32, #tpu.memory_space<vmem>>, vector<1x8x8xf32>
    %12 = vector.shape_cast %11 : vector<1x8x8xf32> to vector<8x8xf32>
    %cst_13 = arith.constant dense<0.000000e+00> : vector<8x256xf32>
    %13 = tpu.matmul %12, %10, %cst_13 {dimension_numbers = #tpu.dot_dimension_numbers<[1], [0], [0], [1], [0, 0, 1, 1], [], []>} : vector<8x8xf32>, vector<8x256xf32>, vector<8x256xf32> -> vector<8x256xf32>
    %c16_i32 = arith.constant 16 : i32
    %14 = tpu.dynamic_rotate %3 by %c16_i32 dim 1 : vector<8x256xf32>, i32 -> vector<8x256xf32>
    %c1 = arith.constant 1 : index
    %c0_14 = arith.constant 0 : index
    %c0_15 = arith.constant 0 : index
    %15 = vector.load %arg6[%c1, %c0_14, %c0_15] : memref<9x8x256xf32, #tpu.memory_space<vmem>>, vector<1x8x256xf32>
    %16 = vector.shape_cast %15 : vector<1x8x256xf32> to vector<8x256xf32>
    %cst_16 = arith.constant 5.000000e-01 : f32
    %17 = vector.broadcast %cst_16 : f32 to vector<8x256xf32>
    %18 = arith.cmpf ogt, %16, %17 : vector<8x256xf32>
    %cst_17 = arith.constant 0.000000e+00 : f32
    %19 = vector.broadcast %cst_17 : f32 to vector<8x256xf32>
    %20 = arith.select %18, %14, %19 : vector<8x256xi1>, vector<8x256xf32>
    %c1_18 = arith.constant 1 : index
    %c0_19 = arith.constant 0 : index
    %c0_20 = arith.constant 0 : index
    %21 = vector.load %arg2[%c1_18, %c0_19, %c0_20] : memref<9x8x8xf32, #tpu.memory_space<vmem>>, vector<1x8x8xf32>
    %22 = vector.shape_cast %21 : vector<1x8x8xf32> to vector<8x8xf32>
    %cst_21 = arith.constant dense<0.000000e+00> : vector<8x256xf32>
    %23 = tpu.matmul %22, %20, %cst_21 {dimension_numbers = #tpu.dot_dimension_numbers<[1], [0], [0], [1], [0, 0, 1, 1], [], []>} : vector<8x8xf32>, vector<8x256xf32>, vector<8x256xf32> -> vector<8x256xf32>
    %24 = arith.addf %13, %23 : vector<8x256xf32>
    %c15_i32 = arith.constant 15 : i32
    %25 = tpu.dynamic_rotate %3 by %c15_i32 dim 1 : vector<8x256xf32>, i32 -> vector<8x256xf32>
    %c2 = arith.constant 2 : index
    %c0_22 = arith.constant 0 : index
    %c0_23 = arith.constant 0 : index
    %26 = vector.load %arg6[%c2, %c0_22, %c0_23] : memref<9x8x256xf32, #tpu.memory_space<vmem>>, vector<1x8x256xf32>
    %27 = vector.shape_cast %26 : vector<1x8x256xf32> to vector<8x256xf32>
    %cst_24 = arith.constant 5.000000e-01 : f32
    %28 = vector.broadcast %cst_24 : f32 to vector<8x256xf32>
    %29 = arith.cmpf ogt, %27, %28 : vector<8x256xf32>
    %cst_25 = arith.constant 0.000000e+00 : f32
    %30 = vector.broadcast %cst_25 : f32 to vector<8x256xf32>
    %31 = arith.select %29, %25, %30 : vector<8x256xi1>, vector<8x256xf32>
    %c2_26 = arith.constant 2 : index
    %c0_27 = arith.constant 0 : index
    %c0_28 = arith.constant 0 : index
    %32 = vector.load %arg2[%c2_26, %c0_27, %c0_28] : memref<9x8x8xf32, #tpu.memory_space<vmem>>, vector<1x8x8xf32>
    %33 = vector.shape_cast %32 : vector<1x8x8xf32> to vector<8x8xf32>
    %cst_29 = arith.constant dense<0.000000e+00> : vector<8x256xf32>
    %34 = tpu.matmul %33, %31, %cst_29 {dimension_numbers = #tpu.dot_dimension_numbers<[1], [0], [0], [1], [0, 0, 1, 1], [], []>} : vector<8x8xf32>, vector<8x256xf32>, vector<8x256xf32> -> vector<8x256xf32>
    %35 = arith.addf %24, %34 : vector<8x256xf32>
    %c1_i32 = arith.constant 1 : i32
    %36 = tpu.dynamic_rotate %3 by %c1_i32 dim 1 : vector<8x256xf32>, i32 -> vector<8x256xf32>
    %c3 = arith.constant 3 : index
    %c0_30 = arith.constant 0 : index
    %c0_31 = arith.constant 0 : index
    %37 = vector.load %arg6[%c3, %c0_30, %c0_31] : memref<9x8x256xf32, #tpu.memory_space<vmem>>, vector<1x8x256xf32>
    %38 = vector.shape_cast %37 : vector<1x8x256xf32> to vector<8x256xf32>
    %cst_32 = arith.constant 5.000000e-01 : f32
    %39 = vector.broadcast %cst_32 : f32 to vector<8x256xf32>
    %40 = arith.cmpf ogt, %38, %39 : vector<8x256xf32>
    %cst_33 = arith.constant 0.000000e+00 : f32
    %41 = vector.broadcast %cst_33 : f32 to vector<8x256xf32>
    %42 = arith.select %40, %36, %41 : vector<8x256xi1>, vector<8x256xf32>
    %c3_34 = arith.constant 3 : index
    %c0_35 = arith.constant 0 : index
    %c0_36 = arith.constant 0 : index
    %43 = vector.load %arg2[%c3_34, %c0_35, %c0_36] : memref<9x8x8xf32, #tpu.memory_space<vmem>>, vector<1x8x8xf32>
    %44 = vector.shape_cast %43 : vector<1x8x8xf32> to vector<8x8xf32>
    %cst_37 = arith.constant dense<0.000000e+00> : vector<8x256xf32>
    %45 = tpu.matmul %44, %42, %cst_37 {dimension_numbers = #tpu.dot_dimension_numbers<[1], [0], [0], [1], [0, 0, 1, 1], [], []>} : vector<8x8xf32>, vector<8x256xf32>, vector<8x256xf32> -> vector<8x256xf32>
    %46 = arith.addf %35, %45 : vector<8x256xf32>
    %c4 = arith.constant 4 : index
    %c0_38 = arith.constant 0 : index
    %c0_39 = arith.constant 0 : index
    %47 = vector.load %arg6[%c4, %c0_38, %c0_39] : memref<9x8x256xf32, #tpu.memory_space<vmem>>, vector<1x8x256xf32>
    %48 = vector.shape_cast %47 : vector<1x8x256xf32> to vector<8x256xf32>
    %cst_40 = arith.constant 5.000000e-01 : f32
    %49 = vector.broadcast %cst_40 : f32 to vector<8x256xf32>
    %50 = arith.cmpf ogt, %48, %49 : vector<8x256xf32>
    %cst_41 = arith.constant 0.000000e+00 : f32
    %51 = vector.broadcast %cst_41 : f32 to vector<8x256xf32>
    %52 = arith.select %50, %3, %51 : vector<8x256xi1>, vector<8x256xf32>
    %c4_42 = arith.constant 4 : index
    %c0_43 = arith.constant 0 : index
    %c0_44 = arith.constant 0 : index
    %53 = vector.load %arg2[%c4_42, %c0_43, %c0_44] : memref<9x8x8xf32, #tpu.memory_space<vmem>>, vector<1x8x8xf32>
    %54 = vector.shape_cast %53 : vector<1x8x8xf32> to vector<8x8xf32>
    %cst_45 = arith.constant dense<0.000000e+00> : vector<8x256xf32>
    %55 = tpu.matmul %54, %52, %cst_45 {dimension_numbers = #tpu.dot_dimension_numbers<[1], [0], [0], [1], [0, 0, 1, 1], [], []>} : vector<8x8xf32>, vector<8x256xf32>, vector<8x256xf32> -> vector<8x256xf32>
    %56 = arith.addf %46, %55 : vector<8x256xf32>
    %c255_i32 = arith.constant 255 : i32
    %57 = tpu.dynamic_rotate %3 by %c255_i32 dim 1 : vector<8x256xf32>, i32 -> vector<8x256xf32>
    %c5 = arith.constant 5 : index
    %c0_46 = arith.constant 0 : index
    %c0_47 = arith.constant 0 : index
    %58 = vector.load %arg6[%c5, %c0_46, %c0_47] : memref<9x8x256xf32, #tpu.memory_space<vmem>>, vector<1x8x256xf32>
    %59 = vector.shape_cast %58 : vector<1x8x256xf32> to vector<8x256xf32>
    %cst_48 = arith.constant 5.000000e-01 : f32
    %60 = vector.broadcast %cst_48 : f32 to vector<8x256xf32>
    %61 = arith.cmpf ogt, %59, %60 : vector<8x256xf32>
    %cst_49 = arith.constant 0.000000e+00 : f32
    %62 = vector.broadcast %cst_49 : f32 to vector<8x256xf32>
    %63 = arith.select %61, %57, %62 : vector<8x256xi1>, vector<8x256xf32>
    %c5_50 = arith.constant 5 : index
    %c0_51 = arith.constant 0 : index
    %c0_52 = arith.constant 0 : index
    %64 = vector.load %arg2[%c5_50, %c0_51, %c0_52] : memref<9x8x8xf32, #tpu.memory_space<vmem>>, vector<1x8x8xf32>
    %65 = vector.shape_cast %64 : vector<1x8x8xf32> to vector<8x8xf32>
    %cst_53 = arith.constant dense<0.000000e+00> : vector<8x256xf32>
    %66 = tpu.matmul %65, %63, %cst_53 {dimension_numbers = #tpu.dot_dimension_numbers<[1], [0], [0], [1], [0, 0, 1, 1], [], []>} : vector<8x8xf32>, vector<8x256xf32>, vector<8x256xf32> -> vector<8x256xf32>
    %67 = arith.addf %56, %66 : vector<8x256xf32>
    %c241_i32 = arith.constant 241 : i32
    %68 = tpu.dynamic_rotate %3 by %c241_i32 dim 1 : vector<8x256xf32>, i32 -> vector<8x256xf32>
    %c6 = arith.constant 6 : index
    %c0_54 = arith.constant 0 : index
    %c0_55 = arith.constant 0 : index
    %69 = vector.load %arg6[%c6, %c0_54, %c0_55] : memref<9x8x256xf32, #tpu.memory_space<vmem>>, vector<1x8x256xf32>
    %70 = vector.shape_cast %69 : vector<1x8x256xf32> to vector<8x256xf32>
    %cst_56 = arith.constant 5.000000e-01 : f32
    %71 = vector.broadcast %cst_56 : f32 to vector<8x256xf32>
    %72 = arith.cmpf ogt, %70, %71 : vector<8x256xf32>
    %cst_57 = arith.constant 0.000000e+00 : f32
    %73 = vector.broadcast %cst_57 : f32 to vector<8x256xf32>
    %74 = arith.select %72, %68, %73 : vector<8x256xi1>, vector<8x256xf32>
    %c6_58 = arith.constant 6 : index
    %c0_59 = arith.constant 0 : index
    %c0_60 = arith.constant 0 : index
    %75 = vector.load %arg2[%c6_58, %c0_59, %c0_60] : memref<9x8x8xf32, #tpu.memory_space<vmem>>, vector<1x8x8xf32>
    %76 = vector.shape_cast %75 : vector<1x8x8xf32> to vector<8x8xf32>
    %cst_61 = arith.constant dense<0.000000e+00> : vector<8x256xf32>
    %77 = tpu.matmul %76, %74, %cst_61 {dimension_numbers = #tpu.dot_dimension_numbers<[1], [0], [0], [1], [0, 0, 1, 1], [], []>} : vector<8x8xf32>, vector<8x256xf32>, vector<8x256xf32> -> vector<8x256xf32>
    %78 = arith.addf %67, %77 : vector<8x256xf32>
    %c240_i32 = arith.constant 240 : i32
    %79 = tpu.dynamic_rotate %3 by %c240_i32 dim 1 : vector<8x256xf32>, i32 -> vector<8x256xf32>
    %c7 = arith.constant 7 : index
    %c0_62 = arith.constant 0 : index
    %c0_63 = arith.constant 0 : index
    %80 = vector.load %arg6[%c7, %c0_62, %c0_63] : memref<9x8x256xf32, #tpu.memory_space<vmem>>, vector<1x8x256xf32>
    %81 = vector.shape_cast %80 : vector<1x8x256xf32> to vector<8x256xf32>
    %cst_64 = arith.constant 5.000000e-01 : f32
    %82 = vector.broadcast %cst_64 : f32 to vector<8x256xf32>
    %83 = arith.cmpf ogt, %81, %82 : vector<8x256xf32>
    %cst_65 = arith.constant 0.000000e+00 : f32
    %84 = vector.broadcast %cst_65 : f32 to vector<8x256xf32>
    %85 = arith.select %83, %79, %84 : vector<8x256xi1>, vector<8x256xf32>
    %c7_66 = arith.constant 7 : index
    %c0_67 = arith.constant 0 : index
    %c0_68 = arith.constant 0 : index
    %86 = vector.load %arg2[%c7_66, %c0_67, %c0_68] : memref<9x8x8xf32, #tpu.memory_space<vmem>>, vector<1x8x8xf32>
    %87 = vector.shape_cast %86 : vector<1x8x8xf32> to vector<8x8xf32>
    %cst_69 = arith.constant dense<0.000000e+00> : vector<8x256xf32>
    %88 = tpu.matmul %87, %85, %cst_69 {dimension_numbers = #tpu.dot_dimension_numbers<[1], [0], [0], [1], [0, 0, 1, 1], [], []>} : vector<8x8xf32>, vector<8x256xf32>, vector<8x256xf32> -> vector<8x256xf32>
    %89 = arith.addf %78, %88 : vector<8x256xf32>
    %c239_i32 = arith.constant 239 : i32
    %90 = tpu.dynamic_rotate %3 by %c239_i32 dim 1 : vector<8x256xf32>, i32 -> vector<8x256xf32>
    %c8 = arith.constant 8 : index
    %c0_70 = arith.constant 0 : index
    %c0_71 = arith.constant 0 : index
    %91 = vector.load %arg6[%c8, %c0_70, %c0_71] : memref<9x8x256xf32, #tpu.memory_space<vmem>>, vector<1x8x256xf32>
    %92 = vector.shape_cast %91 : vector<1x8x256xf32> to vector<8x256xf32>
    %cst_72 = arith.constant 5.000000e-01 : f32
    %93 = vector.broadcast %cst_72 : f32 to vector<8x256xf32>
    %94 = arith.cmpf ogt, %92, %93 : vector<8x256xf32>
    %cst_73 = arith.constant 0.000000e+00 : f32
    %95 = vector.broadcast %cst_73 : f32 to vector<8x256xf32>
    %96 = arith.select %94, %90, %95 : vector<8x256xi1>, vector<8x256xf32>
    %c8_74 = arith.constant 8 : index
    %c0_75 = arith.constant 0 : index
    %c0_76 = arith.constant 0 : index
    %97 = vector.load %arg2[%c8_74, %c0_75, %c0_76] : memref<9x8x8xf32, #tpu.memory_space<vmem>>, vector<1x8x8xf32>
    %98 = vector.shape_cast %97 : vector<1x8x8xf32> to vector<8x8xf32>
    %cst_77 = arith.constant dense<0.000000e+00> : vector<8x256xf32>
    %99 = tpu.matmul %98, %96, %cst_77 {dimension_numbers = #tpu.dot_dimension_numbers<[1], [0], [0], [1], [0, 0, 1, 1], [], []>} : vector<8x8xf32>, vector<8x256xf32>, vector<8x256xf32> -> vector<8x256xf32>
    %100 = arith.addf %89, %99 : vector<8x256xf32>
    %101 = vector.broadcast %0 : vector<8x1xf32> to vector<8x256xf32>
    %102 = arith.addf %100, %101 : vector<8x256xf32>
    %cst_78 = arith.constant 0.000000e+00 : f32
    %103 = vector.broadcast %cst_78 : f32 to vector<8x256xf32>
    %104 = arith.cmpf ogt, %102, %103 : vector<8x256xf32>
    %cst_79 = arith.constant 0.00999999977 : f32
    %105 = vector.broadcast %cst_79 : f32 to vector<8x256xf32>
    %106 = arith.mulf %105, %102 : vector<8x256xf32>
    %107 = arith.select %104, %102, %106 : vector<8x256xi1>, vector<8x256xf32>
    %c17_i32_80 = arith.constant 17 : i32
    %108 = tpu.dynamic_rotate %107 by %c17_i32_80 dim 1 : vector<8x256xf32>, i32 -> vector<8x256xf32>
    %c0_81 = arith.constant 0 : index
    %c0_82 = arith.constant 0 : index
    %c0_83 = arith.constant 0 : index
    %109 = vector.load %arg6[%c0_81, %c0_82, %c0_83] : memref<9x8x256xf32, #tpu.memory_space<vmem>>, vector<1x8x256xf32>
    %110 = vector.shape_cast %109 : vector<1x8x256xf32> to vector<8x256xf32>
    %cst_84 = arith.constant 5.000000e-01 : f32
    %111 = vector.broadcast %cst_84 : f32 to vector<8x256xf32>
    %112 = arith.cmpf ogt, %110, %111 : vector<8x256xf32>
    %cst_85 = arith.constant 0.000000e+00 : f32
    %113 = vector.broadcast %cst_85 : f32 to vector<8x256xf32>
    %114 = arith.select %112, %108, %113 : vector<8x256xi1>, vector<8x256xf32>
    %c0_86 = arith.constant 0 : index
    %c0_87 = arith.constant 0 : index
    %c0_88 = arith.constant 0 : index
    %115 = vector.load %arg4[%c0_86, %c0_87, %c0_88] : memref<9x8x8xf32, #tpu.memory_space<vmem>>, vector<1x8x8xf32>
    %116 = vector.shape_cast %115 : vector<1x8x8xf32> to vector<8x8xf32>
    %cst_89 = arith.constant dense<0.000000e+00> : vector<8x256xf32>
    %117 = tpu.matmul %116, %114, %cst_89 {dimension_numbers = #tpu.dot_dimension_numbers<[1], [0], [0], [1], [0, 0, 1, 1], [], []>} : vector<8x8xf32>, vector<8x256xf32>, vector<8x256xf32> -> vector<8x256xf32>
    %c16_i32_90 = arith.constant 16 : i32
    %118 = tpu.dynamic_rotate %107 by %c16_i32_90 dim 1 : vector<8x256xf32>, i32 -> vector<8x256xf32>
    %c1_91 = arith.constant 1 : index
    %c0_92 = arith.constant 0 : index
    %c0_93 = arith.constant 0 : index
    %119 = vector.load %arg6[%c1_91, %c0_92, %c0_93] : memref<9x8x256xf32, #tpu.memory_space<vmem>>, vector<1x8x256xf32>
    %120 = vector.shape_cast %119 : vector<1x8x256xf32> to vector<8x256xf32>
    %cst_94 = arith.constant 5.000000e-01 : f32
    %121 = vector.broadcast %cst_94 : f32 to vector<8x256xf32>
    %122 = arith.cmpf ogt, %120, %121 : vector<8x256xf32>
    %cst_95 = arith.constant 0.000000e+00 : f32
    %123 = vector.broadcast %cst_95 : f32 to vector<8x256xf32>
    %124 = arith.select %122, %118, %123 : vector<8x256xi1>, vector<8x256xf32>
    %c1_96 = arith.constant 1 : index
    %c0_97 = arith.constant 0 : index
    %c0_98 = arith.constant 0 : index
    %125 = vector.load %arg4[%c1_96, %c0_97, %c0_98] : memref<9x8x8xf32, #tpu.memory_space<vmem>>, vector<1x8x8xf32>
    %126 = vector.shape_cast %125 : vector<1x8x8xf32> to vector<8x8xf32>
    %cst_99 = arith.constant dense<0.000000e+00> : vector<8x256xf32>
    %127 = tpu.matmul %126, %124, %cst_99 {dimension_numbers = #tpu.dot_dimension_numbers<[1], [0], [0], [1], [0, 0, 1, 1], [], []>} : vector<8x8xf32>, vector<8x256xf32>, vector<8x256xf32> -> vector<8x256xf32>
    %128 = arith.addf %117, %127 : vector<8x256xf32>
    %c15_i32_100 = arith.constant 15 : i32
    %129 = tpu.dynamic_rotate %107 by %c15_i32_100 dim 1 : vector<8x256xf32>, i32 -> vector<8x256xf32>
    %c2_101 = arith.constant 2 : index
    %c0_102 = arith.constant 0 : index
    %c0_103 = arith.constant 0 : index
    %130 = vector.load %arg6[%c2_101, %c0_102, %c0_103] : memref<9x8x256xf32, #tpu.memory_space<vmem>>, vector<1x8x256xf32>
    %131 = vector.shape_cast %130 : vector<1x8x256xf32> to vector<8x256xf32>
    %cst_104 = arith.constant 5.000000e-01 : f32
    %132 = vector.broadcast %cst_104 : f32 to vector<8x256xf32>
    %133 = arith.cmpf ogt, %131, %132 : vector<8x256xf32>
    %cst_105 = arith.constant 0.000000e+00 : f32
    %134 = vector.broadcast %cst_105 : f32 to vector<8x256xf32>
    %135 = arith.select %133, %129, %134 : vector<8x256xi1>, vector<8x256xf32>
    %c2_106 = arith.constant 2 : index
    %c0_107 = arith.constant 0 : index
    %c0_108 = arith.constant 0 : index
    %136 = vector.load %arg4[%c2_106, %c0_107, %c0_108] : memref<9x8x8xf32, #tpu.memory_space<vmem>>, vector<1x8x8xf32>
    %137 = vector.shape_cast %136 : vector<1x8x8xf32> to vector<8x8xf32>
    %cst_109 = arith.constant dense<0.000000e+00> : vector<8x256xf32>
    %138 = tpu.matmul %137, %135, %cst_109 {dimension_numbers = #tpu.dot_dimension_numbers<[1], [0], [0], [1], [0, 0, 1, 1], [], []>} : vector<8x8xf32>, vector<8x256xf32>, vector<8x256xf32> -> vector<8x256xf32>
    %139 = arith.addf %128, %138 : vector<8x256xf32>
    %c1_i32_110 = arith.constant 1 : i32
    %140 = tpu.dynamic_rotate %107 by %c1_i32_110 dim 1 : vector<8x256xf32>, i32 -> vector<8x256xf32>
    %c3_111 = arith.constant 3 : index
    %c0_112 = arith.constant 0 : index
    %c0_113 = arith.constant 0 : index
    %141 = vector.load %arg6[%c3_111, %c0_112, %c0_113] : memref<9x8x256xf32, #tpu.memory_space<vmem>>, vector<1x8x256xf32>
    %142 = vector.shape_cast %141 : vector<1x8x256xf32> to vector<8x256xf32>
    %cst_114 = arith.constant 5.000000e-01 : f32
    %143 = vector.broadcast %cst_114 : f32 to vector<8x256xf32>
    %144 = arith.cmpf ogt, %142, %143 : vector<8x256xf32>
    %cst_115 = arith.constant 0.000000e+00 : f32
    %145 = vector.broadcast %cst_115 : f32 to vector<8x256xf32>
    %146 = arith.select %144, %140, %145 : vector<8x256xi1>, vector<8x256xf32>
    %c3_116 = arith.constant 3 : index
    %c0_117 = arith.constant 0 : index
    %c0_118 = arith.constant 0 : index
    %147 = vector.load %arg4[%c3_116, %c0_117, %c0_118] : memref<9x8x8xf32, #tpu.memory_space<vmem>>, vector<1x8x8xf32>
    %148 = vector.shape_cast %147 : vector<1x8x8xf32> to vector<8x8xf32>
    %cst_119 = arith.constant dense<0.000000e+00> : vector<8x256xf32>
    %149 = tpu.matmul %148, %146, %cst_119 {dimension_numbers = #tpu.dot_dimension_numbers<[1], [0], [0], [1], [0, 0, 1, 1], [], []>} : vector<8x8xf32>, vector<8x256xf32>, vector<8x256xf32> -> vector<8x256xf32>
    %150 = arith.addf %139, %149 : vector<8x256xf32>
    %c4_120 = arith.constant 4 : index
    %c0_121 = arith.constant 0 : index
    %c0_122 = arith.constant 0 : index
    %151 = vector.load %arg6[%c4_120, %c0_121, %c0_122] : memref<9x8x256xf32, #tpu.memory_space<vmem>>, vector<1x8x256xf32>
    %152 = vector.shape_cast %151 : vector<1x8x256xf32> to vector<8x256xf32>
    %cst_123 = arith.constant 5.000000e-01 : f32
    %153 = vector.broadcast %cst_123 : f32 to vector<8x256xf32>
    %154 = arith.cmpf ogt, %152, %153 : vector<8x256xf32>
    %cst_124 = arith.constant 0.000000e+00 : f32
    %155 = vector.broadcast %cst_124 : f32 to vector<8x256xf32>
    %156 = arith.select %154, %107, %155 : vector<8x256xi1>, vector<8x256xf32>
    %c4_125 = arith.constant 4 : index
    %c0_126 = arith.constant 0 : index
    %c0_127 = arith.constant 0 : index
    %157 = vector.load %arg4[%c4_125, %c0_126, %c0_127] : memref<9x8x8xf32, #tpu.memory_space<vmem>>, vector<1x8x8xf32>
    %158 = vector.shape_cast %157 : vector<1x8x8xf32> to vector<8x8xf32>
    %cst_128 = arith.constant dense<0.000000e+00> : vector<8x256xf32>
    %159 = tpu.matmul %158, %156, %cst_128 {dimension_numbers = #tpu.dot_dimension_numbers<[1], [0], [0], [1], [0, 0, 1, 1], [], []>} : vector<8x8xf32>, vector<8x256xf32>, vector<8x256xf32> -> vector<8x256xf32>
    %160 = arith.addf %150, %159 : vector<8x256xf32>
    %c255_i32_129 = arith.constant 255 : i32
    %161 = tpu.dynamic_rotate %107 by %c255_i32_129 dim 1 : vector<8x256xf32>, i32 -> vector<8x256xf32>
    %c5_130 = arith.constant 5 : index
    %c0_131 = arith.constant 0 : index
    %c0_132 = arith.constant 0 : index
    %162 = vector.load %arg6[%c5_130, %c0_131, %c0_132] : memref<9x8x256xf32, #tpu.memory_space<vmem>>, vector<1x8x256xf32>
    %163 = vector.shape_cast %162 : vector<1x8x256xf32> to vector<8x256xf32>
    %cst_133 = arith.constant 5.000000e-01 : f32
    %164 = vector.broadcast %cst_133 : f32 to vector<8x256xf32>
    %165 = arith.cmpf ogt, %163, %164 : vector<8x256xf32>
    %cst_134 = arith.constant 0.000000e+00 : f32
    %166 = vector.broadcast %cst_134 : f32 to vector<8x256xf32>
    %167 = arith.select %165, %161, %166 : vector<8x256xi1>, vector<8x256xf32>
    %c5_135 = arith.constant 5 : index
    %c0_136 = arith.constant 0 : index
    %c0_137 = arith.constant 0 : index
    %168 = vector.load %arg4[%c5_135, %c0_136, %c0_137] : memref<9x8x8xf32, #tpu.memory_space<vmem>>, vector<1x8x8xf32>
    %169 = vector.shape_cast %168 : vector<1x8x8xf32> to vector<8x8xf32>
    %cst_138 = arith.constant dense<0.000000e+00> : vector<8x256xf32>
    %170 = tpu.matmul %169, %167, %cst_138 {dimension_numbers = #tpu.dot_dimension_numbers<[1], [0], [0], [1], [0, 0, 1, 1], [], []>} : vector<8x8xf32>, vector<8x256xf32>, vector<8x256xf32> -> vector<8x256xf32>
    %171 = arith.addf %160, %170 : vector<8x256xf32>
    %c241_i32_139 = arith.constant 241 : i32
    %172 = tpu.dynamic_rotate %107 by %c241_i32_139 dim 1 : vector<8x256xf32>, i32 -> vector<8x256xf32>
    %c6_140 = arith.constant 6 : index
    %c0_141 = arith.constant 0 : index
    %c0_142 = arith.constant 0 : index
    %173 = vector.load %arg6[%c6_140, %c0_141, %c0_142] : memref<9x8x256xf32, #tpu.memory_space<vmem>>, vector<1x8x256xf32>
    %174 = vector.shape_cast %173 : vector<1x8x256xf32> to vector<8x256xf32>
    %cst_143 = arith.constant 5.000000e-01 : f32
    %175 = vector.broadcast %cst_143 : f32 to vector<8x256xf32>
    %176 = arith.cmpf ogt, %174, %175 : vector<8x256xf32>
    %cst_144 = arith.constant 0.000000e+00 : f32
    %177 = vector.broadcast %cst_144 : f32 to vector<8x256xf32>
    %178 = arith.select %176, %172, %177 : vector<8x256xi1>, vector<8x256xf32>
    %c6_145 = arith.constant 6 : index
    %c0_146 = arith.constant 0 : index
    %c0_147 = arith.constant 0 : index
    %179 = vector.load %arg4[%c6_145, %c0_146, %c0_147] : memref<9x8x8xf32, #tpu.memory_space<vmem>>, vector<1x8x8xf32>
    %180 = vector.shape_cast %179 : vector<1x8x8xf32> to vector<8x8xf32>
    %cst_148 = arith.constant dense<0.000000e+00> : vector<8x256xf32>
    %181 = tpu.matmul %180, %178, %cst_148 {dimension_numbers = #tpu.dot_dimension_numbers<[1], [0], [0], [1], [0, 0, 1, 1], [], []>} : vector<8x8xf32>, vector<8x256xf32>, vector<8x256xf32> -> vector<8x256xf32>
    %182 = arith.addf %171, %181 : vector<8x256xf32>
    %c240_i32_149 = arith.constant 240 : i32
    %183 = tpu.dynamic_rotate %107 by %c240_i32_149 dim 1 : vector<8x256xf32>, i32 -> vector<8x256xf32>
    %c7_150 = arith.constant 7 : index
    %c0_151 = arith.constant 0 : index
    %c0_152 = arith.constant 0 : index
    %184 = vector.load %arg6[%c7_150, %c0_151, %c0_152] : memref<9x8x256xf32, #tpu.memory_space<vmem>>, vector<1x8x256xf32>
    %185 = vector.shape_cast %184 : vector<1x8x256xf32> to vector<8x256xf32>
    %cst_153 = arith.constant 5.000000e-01 : f32
    %186 = vector.broadcast %cst_153 : f32 to vector<8x256xf32>
    %187 = arith.cmpf ogt, %185, %186 : vector<8x256xf32>
    %cst_154 = arith.constant 0.000000e+00 : f32
    %188 = vector.broadcast %cst_154 : f32 to vector<8x256xf32>
    %189 = arith.select %187, %183, %188 : vector<8x256xi1>, vector<8x256xf32>
    %c7_155 = arith.constant 7 : index
    %c0_156 = arith.constant 0 : index
    %c0_157 = arith.constant 0 : index
    %190 = vector.load %arg4[%c7_155, %c0_156, %c0_157] : memref<9x8x8xf32, #tpu.memory_space<vmem>>, vector<1x8x8xf32>
    %191 = vector.shape_cast %190 : vector<1x8x8xf32> to vector<8x8xf32>
    %cst_158 = arith.constant dense<0.000000e+00> : vector<8x256xf32>
    %192 = tpu.matmul %191, %189, %cst_158 {dimension_numbers = #tpu.dot_dimension_numbers<[1], [0], [0], [1], [0, 0, 1, 1], [], []>} : vector<8x8xf32>, vector<8x256xf32>, vector<8x256xf32> -> vector<8x256xf32>
    %193 = arith.addf %182, %192 : vector<8x256xf32>
    %c239_i32_159 = arith.constant 239 : i32
    %194 = tpu.dynamic_rotate %107 by %c239_i32_159 dim 1 : vector<8x256xf32>, i32 -> vector<8x256xf32>
    %c8_160 = arith.constant 8 : index
    %c0_161 = arith.constant 0 : index
    %c0_162 = arith.constant 0 : index
    %195 = vector.load %arg6[%c8_160, %c0_161, %c0_162] : memref<9x8x256xf32, #tpu.memory_space<vmem>>, vector<1x8x256xf32>
    %196 = vector.shape_cast %195 : vector<1x8x256xf32> to vector<8x256xf32>
    %cst_163 = arith.constant 5.000000e-01 : f32
    %197 = vector.broadcast %cst_163 : f32 to vector<8x256xf32>
    %198 = arith.cmpf ogt, %196, %197 : vector<8x256xf32>
    %cst_164 = arith.constant 0.000000e+00 : f32
    %199 = vector.broadcast %cst_164 : f32 to vector<8x256xf32>
    %200 = arith.select %198, %194, %199 : vector<8x256xi1>, vector<8x256xf32>
    %c8_165 = arith.constant 8 : index
    %c0_166 = arith.constant 0 : index
    %c0_167 = arith.constant 0 : index
    %201 = vector.load %arg4[%c8_165, %c0_166, %c0_167] : memref<9x8x8xf32, #tpu.memory_space<vmem>>, vector<1x8x8xf32>
    %202 = vector.shape_cast %201 : vector<1x8x8xf32> to vector<8x8xf32>
    %cst_168 = arith.constant dense<0.000000e+00> : vector<8x256xf32>
    %203 = tpu.matmul %202, %200, %cst_168 {dimension_numbers = #tpu.dot_dimension_numbers<[1], [0], [0], [1], [0, 0, 1, 1], [], []>} : vector<8x8xf32>, vector<8x256xf32>, vector<8x256xf32> -> vector<8x256xf32>
    %204 = arith.addf %193, %203 : vector<8x256xf32>
    %205 = vector.broadcast %1 : vector<8x1xf32> to vector<8x256xf32>
    %206 = arith.addf %204, %205 : vector<8x256xf32>
    %207 = arith.addf %206, %3 : vector<8x256xf32>
    %cst_169 = arith.constant 0.000000e+00 : f32
    %208 = vector.broadcast %cst_169 : f32 to vector<8x256xf32>
    %209 = arith.cmpf ogt, %207, %208 : vector<8x256xf32>
    %cst_170 = arith.constant 0.00999999977 : f32
    %210 = vector.broadcast %cst_170 : f32 to vector<8x256xf32>
    %211 = arith.mulf %210, %207 : vector<8x256xf32>
    %212 = arith.select %209, %207, %211 : vector<8x256xi1>, vector<8x256xf32>
    %213 = vector.extract_strided_slice %212 {offsets = [0, 0], sizes = [4, 256], strides = [1, 1]} : vector<8x256xf32> to vector<4x256xf32>
    %c0_171 = arith.constant 0 : index
    %c0_172 = arith.constant 0 : index
    %c0_173 = arith.constant 0 : index
    %214 = vector.load %arg7[%c0_171, %c0_172, %c0_173] : memref<1x4x256xf32, #tpu.memory_space<vmem>>, vector<1x4x256xf32>
    %215 = vector.shape_cast %214 : vector<1x4x256xf32> to vector<4x256xf32>
    %216 = vector.shape_cast %213 : vector<4x256xf32> to vector<1x4x256xf32>
    tpu.vector_store %arg7[%c0_171, %c0_172, %c0_173], %216 {strides = array<i32>} : memref<1x4x256xf32, #tpu.memory_space<vmem>>, vector<1x4x256xf32>,
    return
  }
  func.func @transform_0(%arg0: i32) -> (i32, i32, i32) {
    %c0_i32 = arith.constant 0 : i32
    %c0_i32_0 = arith.constant 0 : i32
    %c0_i32_1 = arith.constant 0 : i32
    return %arg0, %c0_i32, %c0_i32_0 : i32, i32, i32
  }
  func.func @transform_1(%arg0: i32) -> (i32, i32, i32) {
    %c0_i32 = arith.constant 0 : i32
    %c0_i32_0 = arith.constant 0 : i32
    %c0_i32_1 = arith.constant 0 : i32
    %c0_i32_2 = arith.constant 0 : i32
    return %c0_i32, %c0_i32_0, %c0_i32_1 : i32, i32, i32
  }
  func.func @transform_2(%arg0: i32) -> (i32, i32) {
    %c0_i32 = arith.constant 0 : i32
    %c0_i32_0 = arith.constant 0 : i32
    %c0_i32_1 = arith.constant 0 : i32
    return %c0_i32, %c0_i32_0 : i32, i32
  }
  func.func @transform_3(%arg0: i32) -> (i32, i32, i32) {
    %c0_i32 = arith.constant 0 : i32
    %c0_i32_0 = arith.constant 0 : i32
    %c0_i32_1 = arith.constant 0 : i32
    %c0_i32_2 = arith.constant 0 : i32
    return %c0_i32, %c0_i32_0, %c0_i32_1 : i32, i32, i32
  }
  func.func @transform_4(%arg0: i32) -> (i32, i32) {
    %c0_i32 = arith.constant 0 : i32
    %c0_i32_0 = arith.constant 0 : i32
    %c0_i32_1 = arith.constant 0 : i32
    return %c0_i32, %c0_i32_0 : i32, i32
  }
  func.func @transform_5(%arg0: i32) -> (i32, i32, i32) {
    %c0_i32 = arith.constant 0 : i32
    %c0_i32_0 = arith.constant 0 : i32
    %c0_i32_1 = arith.constant 0 : i32
    %c0_i32_2 = arith.constant 0 : i32
    return %c0_i32, %c0_i32_0, %c0_i32_1 : i32, i32, i32
  }
  func.func @transform_6(%arg0: i32) -> (i32, i32, i32) {
    %c0_i32 = arith.constant 0 : i32
    %c0_i32_0 = arith.constant 0 : i32
    %c0_i32_1 = arith.constant 0 : i32
    return %arg0, %c0_i32, %c0_i32_0 : i32, i32, i32
  }
}

</mosaic_0001>

<llo_original>
// kernel: tpu_custom_call.1
$region0: #{tpu_custom_call.1}
  #allocation0 [shape = 'u32[]', space=smem, size = 0x4, offset = 0x4, fixed_abs, tag = 'smem constant byte address 0x4 - core index']
  #allocation1 [shape = 'u32[144,128]{1,0:T(1,128)}', space=vmem, size = 0x12000, scoped, tag = 'internal scratch']
  %s0 = inlined_call_operand.vmem [shape: f32[2,8,256], index: 0, kind: input, shape index: {}]
  %s1 = inlined_call_operand.vmem [shape: f32[9,8,8], index: 1, kind: input, shape index: {}]
  %s2 = inlined_call_operand.vmem [shape: f32[8,1], index: 2, kind: input, shape index: {}]
  %s3 = inlined_call_operand.vmem [shape: f32[9,8,8], index: 3, kind: input, shape index: {}]
  %s4 = inlined_call_operand.vmem [shape: f32[8,1], index: 4, kind: input, shape index: {}]
  %s5 = inlined_call_operand.vmem [shape: f32[9,8,256], index: 5, kind: input, shape index: {}]
  %s6 = inlined_call_operand.hbm [shape: f32[2,4,256], index: 6, kind: output, shape index: {}]
  %s7 = sld [smem:[#allocation0]]
  $region57: #{tpu_custom_call.1} parent=0
    _
  %s9 = ssub.s32 1, %s7
  %s10 = scalar_select 0, %s9, %s7
  $region1: #{tpu_custom_call.1} parent=0
    #allocation2 [shape = 'u8[8192]{0}', space=vmem, size = 0x2000, scoped, tag = 'output window, operand 0']
    #allocation3 [shape = 's32[2]{0}', space=sflag, size = 0x8, scoped, tag = 'scoped memory for tpu_custom_call.1']
    %11 = vsyncpa [#allocation3], 0
    %s12 = scalar_lea.sflag [#allocation3], 1
    %13 = vsyncpa %s12, 0
    loop: start=0, step=1, limit=4
    $region2: #{tpu_custom_call.1} parent=1 // loop_pre_header
      _
    $region3: #{tpu_custom_call.1} parent=1 // loop_header
      %s15 = sphi 0, %s19
      %p16 = scmp.ge.s32.totalorder %s15, 4
      %s25 = sphi 0, %s27
      %s28 = sphi 0, %s25
      %s29 = sphi 0, %s28
      %s45 = sphi 0, %s29
      %s49 = sphi 0, %s49
      %s51 = sphi 0, %s49
      %s52 = sphi 0, %s51
      %s66 = sphi 0, %s52
      %s70 = sphi 0, %s70
      %s72 = sphi 0, %s70
      %s73 = sphi 0, %s72
      %s87 = sphi 0, %s73
      %s91 = sphi 0, %s91
      %s93 = sphi 0, %s91
      %s94 = sphi 0, %s93
      %s108 = sphi 0, %s94
      %s112 = sphi 0, %s112
      %s114 = sphi 0, %s112
      %s115 = sphi 0, %s114
      %s129 = sphi 0, %s115
      %s133 = sphi 0, %s133
      %s135 = sphi 0, %s133
      %s136 = sphi 0, %s135
      %s150 = sphi 0, %s136
      %s156 = sphi 0, %s158
      %s159 = sphi 0, %s156
      %s160 = sphi 0, %s159
      %s176 = sphi 0, %s160
    $region4: #{tpu_custom_call.1} parent=1 // loop_header_branch
      %18 = sbr.rel (%p16) target = $region8
    $region5: #{tpu_custom_call.1} parent=1 // loop_body
      %s20 = ssub.s32 %s15, 1
      %s21 = ssub.s32 %s15, 2
      %s22 = sadd.s32 %s15, 1
      %s23 = ssub.s32 %s15, %s22
      %p24 = scmp.eq.s32.totalorder %s23, 0
      %s26 = sadd.s32 %s25, 1
      %s27 = scalar_select %p24, %s25, %s26
      %p30 = pneg %p24
      %p31 = scmp.eq.s32.totalorder %s15, 1
      %p32 = por %p30, %p31
      %p33 = scmp.ne.s32.totalorder %s25, %s28
      %p34 = scmp.eq.s32.totalorder %s15, 0
      %p35 = por %p33, %p34
      %p36 = scmp.ne.s32.totalorder %s25, %s28
      %p37 = scmp.eq.s32.totalorder %s20, 1
      %p38 = por %p36, %p37
      %p39 = scmp.ne.s32.totalorder %s28, %s29
      %p40 = scmp.eq.s32.totalorder %s20, 0
      %p41 = por %p39, %p40
      %p42 = scmp.ne.s32.totalorder %s28, %s29
      %p43 = scmp.eq.s32.totalorder %s21, 1
      %p44 = por %p42, %p43
      %p46 = scmp.ne.s32.totalorder %s29, %s45
      %p47 = scmp.eq.s32.totalorder %s21, 0
      %p48 = por %p46, %p47
      %s50 = sadd.s32 %s49, 1
      %p53 = scmp.eq.s32.totalorder %s15, 1
      %p54 = scmp.ne.s32.totalorder %s49, %s51
      %p55 = scmp.eq.s32.totalorder %s15, 0
      %p56 = por %p54, %p55
      %p57 = scmp.ne.s32.totalorder %s49, %s51
      %p58 = scmp.eq.s32.totalorder %s20, 1
      %p59 = por %p57, %p58
      %p60 = scmp.ne.s32.totalorder %s51, %s52
      %p61 = scmp.eq.s32.totalorder %s20, 0
      %p62 = por %p60, %p61
      %p63 = scmp.ne.s32.totalorder %s51, %s52
      %p64 = scmp.eq.s32.totalorder %s21, 1
      %p65 = por %p63, %p64
      %p67 = scmp.ne.s32.totalorder %s52, %s66
      %p68 = scmp.eq.s32.totalorder %s21, 0
      %p69 = por %p67, %p68
      %s71 = sadd.s32 %s70, 1
      %p74 = scmp.eq.s32.totalorder %s15, 1
      %p75 = scmp.ne.s32.totalorder %s70, %s72
      %p76 = scmp.eq.s32.totalorder %s15, 0
      %p77 = por %p75, %p76
      %p78 = scmp.ne.s32.totalorder %s70, %s72
      %p79 = scmp.eq.s32.totalorder %s20, 1
      %p80 = por %p78, %p79
      %p81 = scmp.ne.s32.totalorder %s72, %s73
      %p82 = scmp.eq.s32.totalorder %s20, 0
      %p83 = por %p81, %p82
      %p84 = scmp.ne.s32.totalorder %s72, %s73
      %p85 = scmp.eq.s32.totalorder %s21, 1
      %p86 = por %p84, %p85
      %p88 = scmp.ne.s32.totalorder %s73, %s87
      %p89 = scmp.eq.s32.totalorder %s21, 0
      %p90 = por %p88, %p89
      %s92 = sadd.s32 %s91, 1
      %p95 = scmp.eq.s32.totalorder %s15, 1
      %p96 = scmp.ne.s32.totalorder %s91, %s93
      %p97 = scmp.eq.s32.totalorder %s15, 0
      %p98 = por %p96, %p97
      %p99 = scmp.ne.s32.totalorder %s91, %s93
      %p100 = scmp.eq.s32.totalorder %s20, 1
      %p101 = por %p99, %p100
      %p102 = scmp.ne.s32.totalorder %s93, %s94
      %p103 = scmp.eq.s32.totalorder %s20, 0
      %p104 = por %p102, %p103
      %p105 = scmp.ne.s32.totalorder %s93, %s94
      %p106 = scmp.eq.s32.totalorder %s21, 1
      %p107 = por %p105, %p106
      %p109 = scmp.ne.s32.totalorder %s94, %s108
      %p110 = scmp.eq.s32.totalorder %s21, 0
      %p111 = por %p109, %p110
      %s113 = sadd.s32 %s112, 1
      %p116 = scmp.eq.s32.totalorder %s15, 1
      %p117 = scmp.ne.s32.totalorder %s112, %s114
      %p118 = scmp.eq.s32.totalorder %s15, 0
      %p119 = por %p117, %p118
      %p120 = scmp.ne.s32.totalorder %s112, %s114
      %p121 = scmp.eq.s32.totalorder %s20, 1
      %p122 = por %p120, %p121
      %p123 = scmp.ne.s32.totalorder %s114, %s115
      %p124 = scmp.eq.s32.totalorder %s20, 0
      %p125 = por %p123, %p124
      %p126 = scmp.ne.s32.totalorder %s114, %s115
      %p127 = scmp.eq.s32.totalorder %s21, 1
      %p128 = por %p126, %p127
      %p130 = scmp.ne.s32.totalorder %s115, %s129
      %p131 = scmp.eq.s32.totalorder %s21, 0
      %p132 = por %p130, %p131
      %s134 = sadd.s32 %s133, 1
      %p137 = scmp.eq.s32.totalorder %s15, 1
      %p138 = scmp.ne.s32.totalorder %s133, %s135
      %p139 = scmp.eq.s32.totalorder %s15, 0
      %p140 = por %p138, %p139
      %p141 = scmp.ne.s32.totalorder %s133, %s135
      %p142 = scmp.eq.s32.totalorder %s20, 1
      %p143 = por %p141, %p142
      %p144 = scmp.ne.s32.totalorder %s135, %s136
      %p145 = scmp.eq.s32.totalorder %s20, 0
      %p146 = por %p144, %p145
      %p147 = scmp.ne.s32.totalorder %s135, %s136
      %p148 = scmp.eq.s32.totalorder %s21, 1
      %p149 = por %p147, %p148
      %p151 = scmp.ne.s32.totalorder %s136, %s150
      %p152 = scmp.eq.s32.totalorder %s21, 0
      %p153 = por %p151, %p152
      %s154 = ssub.s32 %s15, %s22
      %p155 = scmp.eq.s32.totalorder %s154, 0
      %s157 = sadd.s32 %s156, 1
      %s158 = scalar_select %p155, %s156, %s157
      %p161 = pneg %p155
      %p162 = scmp.eq.s32.totalorder %s15, 1
      %p163 = por %p161, %p162
      %p164 = scmp.ne.s32.totalorder %s156, %s159
      %p165 = scmp.eq.s32.totalorder %s15, 0
      %p166 = por %p164, %p165
      %p167 = scmp.ne.s32.totalorder %s156, %s159
      %p168 = scmp.eq.s32.totalorder %s20, 1
      %p169 = por %p167, %p168
      %p170 = scmp.ne.s32.totalorder %s159, %s160
      %p171 = scmp.eq.s32.totalorder %s20, 0
      %p172 = por %p170, %p171
      %p173 = scmp.ne.s32.totalorder %s159, %s160
      %p174 = scmp.eq.s32.totalorder %s21, 1
      %p175 = por %p173, %p174
      %p177 = scmp.ne.s32.totalorder %s160, %s176
      %p178 = scmp.eq.s32.totalorder %s21, 0
      %p179 = por %p177, %p178
      %p180 = scmp.le.s32.totalorder 1, %s15
      %p181 = scmp.lt.s32.totalorder %s15, 3
      %p182 = pnand %p180, %p181
      %p183 = pneg %p182
      // Predicated region
      $region9: #{tpu_custom_call.1} parent=5 // pred_check
        _
      $region10: #{tpu_custom_call.1} parent=5 // pred_check_branch
        %185 = sbr.rel (%p182) target = $region12
      $region11: #{tpu_custom_call.1} parent=5 // pred_region
        %s186 = ssub.s32 %s15, 1
        // Predicated region
        $region13: #{tpu_custom_call.1} parent=11 // pred_check
          %p187 = pneg %p62
        $region14: #{tpu_custom_call.1} parent=11 // pred_check_branch
          %189 = sbr.rel (%p187) target = $region16
        $region15: #{tpu_custom_call.1} parent=11 // pred_region
          _
        $region16: #{tpu_custom_call.1} parent=11 // pred_fallthru
          _
        // Predicated region
        $region17: #{tpu_custom_call.1} parent=11 // pred_check
          %p190 = pneg %p83
        $region18: #{tpu_custom_call.1} parent=11 // pred_check_branch
          %192 = sbr.rel (%p190) target = $region20
        $region19: #{tpu_custom_call.1} parent=11 // pred_region
          _
        $region20: #{tpu_custom_call.1} parent=11 // pred_fallthru
          _
        // Predicated region
        $region21: #{tpu_custom_call.1} parent=11 // pred_check
          %p193 = pneg %p104
        $region22: #{tpu_custom_call.1} parent=11 // pred_check_branch
          %195 = sbr.rel (%p193) target = $region24
        $region23: #{tpu_custom_call.1} parent=11 // pred_region
          _
        $region24: #{tpu_custom_call.1} parent=11 // pred_fallthru
          _
        // Predicated region
        $region25: #{tpu_custom_call.1} parent=11 // pred_check
          %p196 = pneg %p125
        $region26: #{tpu_custom_call.1} parent=11 // pred_check_branch
          %198 = sbr.rel (%p196) target = $region28
        $region27: #{tpu_custom_call.1} parent=11 // pred_region
          _
        $region28: #{tpu_custom_call.1} parent=11 // pred_fallthru
          _
        // Predicated region
        $region29: #{tpu_custom_call.1} parent=11 // pred_check
          %p199 = pneg %p146
        $region30: #{tpu_custom_call.1} parent=11 // pred_check_branch
          %201 = sbr.rel (%p199) target = $region32
        $region31: #{tpu_custom_call.1} parent=11 // pred_region
          _
        $region32: #{tpu_custom_call.1} parent=11 // pred_fallthru
          _
      $region12: #{tpu_custom_call.1} parent=5 // pred_fallthru
        _
      %p202 = scmp.lt.s32.totalorder %s15, 2
      // Predicated region
      $region33: #{tpu_custom_call.1} parent=5 // pred_check
        %p203 = pneg %p202
      $region34: #{tpu_custom_call.1} parent=5 // pred_check_branch
        %205 = sbr.rel (%p203) target = $region36
      $region35: #{tpu_custom_call.1} parent=5 // pred_region
        // Predicated region
        $region37: #{tpu_custom_call.1} parent=35 // pred_check
          %p206 = pneg %p35
        $region38: #{tpu_custom_call.1} parent=35 // pred_check_branch
          %208 = sbr.rel (%p206) target = $region40
        $region39: #{tpu_custom_call.1} parent=35 // pred_region
          %p209 = scmp.lt.s32.totalorder %s15, 1
          %s210 = scalar_select %p209, %s15, 1
          %s211 = smul.addr %s210, 2
          %s212 = smul.addr %s211, 8
          %s213 = scalar_lea.vmem %s0, %s212
        $region40: #{tpu_custom_call.1} parent=35 // pred_fallthru
          _
      $region36: #{tpu_custom_call.1} parent=5 // pred_fallthru
        _
      %p214 = scmp.le.s32.totalorder 1, %s15
      %p215 = scmp.lt.s32.totalorder %s15, 3
      %p216 = pnand %p214, %p215
      %p217 = pneg %p216
      // Predicated region
      $region41: #{tpu_custom_call.1} parent=5 // pred_check
        _
      $region42: #{tpu_custom_call.1} parent=5 // pred_check_branch
        %219 = sbr.rel (%p216) target = $region44
      $region43: #{tpu_custom_call.1} parent=5 // pred_region
        %s220 = ssub.s32 %s15, 1
        %p221 = scmp.lt.s32.totalorder %s20, 1
        %s222 = scalar_select %p221, %s20, 1
        %s223 = smul.addr %s222, 2
        %s224 = smul.addr %s223, 8
        %s225 = scalar_lea.vmem %s0, %s224
        %p226 = pneg %p41
        %p227 = pneg %p38
        %p228 = pneg %p62
        %p229 = pneg %p59
        %p230 = pneg %p83
        %p231 = pneg %p80
        %p232 = pneg %p104
        %p233 = pneg %p101
        %p234 = pneg %p125
        %p235 = pneg %p122
        %p236 = pneg %p146
        %p237 = pneg %p143
        %p238 = pneg %p172
        %p239 = pneg %p169
        %s240 = sand.u32 %s159, 1
        %s241 = scalar_lea.sflag [#allocation3], %s240
        %s242 = sand.u32 %s159, 1
        %s243 = smul.addr %s242, 8
        %s244 = scalar_lea.vmem [#allocation2], %s243
        %p245 = scmp.lt.s32.totalorder %s20, 1
        %s246 = scalar_select %p245, %s20, 1
        %s247 = smul.addr %s246, 2
        %s248 = smul.addr %s247, 8
        %s249 = scalar_lea.vmem %s0, %s248
        %v250 = vld [vmem:[%s2] sm:$0xff]
        %v251 = vld [vmem:[%s4] sm:$0xff]
        %v252 = vld [vmem:[%s249] sm:$0xff]
        %v253 = vld [vmem:[%s249 + $0x8] sm:$0xff]
        %254 = vrot.lane.b32.xlu0 %v252, 17
        %v255 = vpop.permute.xlu0 %254
        %256 = vrot.lane.b32.xlu0 %v253, 17
        %v257 = vpop.permute.xlu0 %256
        %v258 = vlaneseq
        %v259 = vand.u32 %v258, 127
        %vm260 = vcmp.lt.s32.totalorder %v259, 17
        %v261 = vsel %vm260, %v255, %v257
        %v262 = vsel %vm260, %v257, %v255
        %v263 = vld [vmem:[%s5] sm:$0xff]
        %v264 = vld [vmem:[%s5 + $0x8] sm:$0xff]
        %vm265 = vcmp.gt.f32.partialorder %v263, 0.5
        %vm266 = vcmp.gt.f32.partialorder %v264, 0.5
        %v267 = vsel %vm265, %v262, 0.0
        %v268 = vsel %vm266, %v261, 0.0
        %v269 = vld [vmem:[%s1] sm:$0xff]
        %270 = vrot.lane.b32.xlu0 %v252, 16
        %v271 = vpop.permute.xlu0 %270
        %272 = vrot.lane.b32.xlu0 %v253, 16
        %v273 = vpop.permute.xlu0 %272
        %vm274 = vcmp.lt.s32.totalorder %v259, 16
        %v275 = vsel %vm274, %v271, %v273
        %v276 = vsel %vm274, %v273, %v271
        %s277 = scalar_lea.vmem %s5, 16
        %v278 = vld [vmem:[%s277] sm:$0xff]
        %v279 = vld [vmem:[%s277 + $0x8] sm:$0xff]
        %vm280 = vcmp.gt.f32.partialorder %v278, 0.5
        %vm281 = vcmp.gt.f32.partialorder %v279, 0.5
        %v282 = vsel %vm280, %v276, 0.0
        %v283 = vsel %vm281, %v275, 0.0
        %s284 = scalar_lea.vmem %s1, 8
        %v285 = vld [vmem:[%s284] sm:$0xff]
        %vm286 = vcmask 64512
        %v288 = vsel %vm286, %v285, 0
        %290 = vmatprep.subr.mxu0 %v283
        %291 = vmatpush1.msra.mxu0 %v282
        %292 = vmatprep.subr.mxu0 0.0
        %293 = vmatpush1.msra.mxu0 0.0
        %294 = vmatprep.subr.mxu0 0.0
        %295 = vmatpush1.msra.mxu0 0.0
        %296 = vmatprep.subr.mxu0 0.0
        %297 = vmatpush1.msra.mxu0 0.0
        %298 = vmatprep.subr.mxu0 0.0
        %299 = vmatpush1.msra.mxu0 0.0
        %300 = vmatprep.subr.mxu0 0.0
        %301 = vmatpush1.msra.mxu0 0.0
        %302 = vmatprep.subr.mxu0 0.0
        %303 = vmatpush1.msra.mxu0 0.0
        %304 = vmatprep.subr.mxu0 0.0
        %305 = vmatpush1.msra.mxu0 0.0
        %306 = vmatprep.subr.mxu0 0.0
        %307 = vmatpush1.msra.mxu0 0.0
        %308 = vmatprep.subr.mxu0 0.0
        %309 = vmatpush1.msra.mxu0 0.0
        %310 = vmatprep.subr.mxu0 0.0
        %311 = vmatpush1.msra.mxu0 0.0
        %312 = vmatprep.subr.mxu0 0.0
        %313 = vmatpush1.msra.mxu0 0.0
        %314 = vmatprep.subr.mxu0 0.0
        %315 = vmatpush1.msra.mxu0 0.0
        %316 = vmatprep.subr.mxu0 0.0
        %317 = vmatpush1.msra.mxu0 0.0
        %318 = vmatprep.subr.mxu0 0.0
        %319 = vmatpush1.msra.mxu0 0.0
        %320 = vmatprep.subr.mxu0 0.0
        %321 = vmatpush1.msra.mxu0 0.0
        %322 = vmatprep.subr.mxu0 0.0
        %323 = vmatpush1.msra.mxu0 0.0
        %324 = vmatprep.subr.mxu0 0.0
        %325 = vmatpush1.msra.mxu0 0.0
        %326 = vmatprep.subr.mxu0 0.0
        %327 = vmatpush1.msra.mxu0 0.0
        %328 = vmatprep.subr.mxu0 0.0
        %329 = vmatpush1.msra.mxu0 0.0
        %330 = vmatprep.subr.mxu0 0.0
        %331 = vmatpush1.msra.mxu0 0.0
        %332 = vmatprep.subr.mxu0 0.0
        %333 = vmatpush1.msra.mxu0 0.0
        %334 = vmatprep.subr.mxu0 0.0
        %335 = vmatpush1.msra.mxu0 0.0
        %336 = vmatprep.subr.mxu0 0.0
        %337 = vmatpush1.msra.mxu0 0.0
        %338 = vmatprep.subr.mxu0 0.0
        %339 = vmatpush1.msra.mxu0 0.0
        %340 = vmatprep.subr.mxu0 0.0
        %341 = vmatpush1.msra.mxu0 0.0
        %342 = vmatprep.subr.mxu0 0.0
        %343 = vmatpush1.msra.mxu0 0.0
        %344 = vmatprep.subr.mxu0 0.0
        %345 = vmatpush1.msra.mxu0 0.0
        %346 = vmatprep.subr.mxu0 0.0
        %347 = vmatpush1.msra.mxu0 0.0
        %348 = vmatprep.subr.mxu0 0.0
        %349 = vmatpush1.msra.mxu0 0.0
        %350 = vmatprep.subr.mxu0 0.0
        %351 = vmatpush1.msra.mxu0 0.0
        %352 = vmatprep.subr.mxu0 0.0
        %353 = vmatpush1.msra.mxu0 0.0
        %354 = vmatprep.mubr.f32.mxu0 0.0
        %355 = vmatmul.mubr.f32.gmra.mrb[0].mxu0 %v288
        %v356 = vpop.f32.mrb[0].mxu0
        %v357 = vadd.f32 0.0, %v356
        %v358 = vpop.f32.mrb[0].mxu0
        %v359 = vadd.f32 0.0, %v358
        %360 = vdwg.mxu0
        %v362 = vsel %vm286, %v269, 0
        %364 = vmatprep.subr.mxu0 %v268
        %365 = vmatpush1.msra.mxu0 %v267
        %366 = vmatprep.subr.mxu0 0.0
        %367 = vmatpush1.msra.mxu0 0.0
        %368 = vmatprep.subr.mxu0 0.0
        %369 = vmatpush1.msra.mxu0 0.0
        %370 = vmatprep.subr.mxu0 0.0
        %371 = vmatpush1.msra.mxu0 0.0
        %372 = vmatprep.subr.mxu0 0.0
        %373 = vmatpush1.msra.mxu0 0.0
        %374 = vmatprep.subr.mxu0 0.0
        %375 = vmatpush1.msra.mxu0 0.0
        %376 = vmatprep.subr.mxu0 0.0
        %377 = vmatpush1.msra.mxu0 0.0
        %378 = vmatprep.subr.mxu0 0.0
        %379 = vmatpush1.msra.mxu0 0.0
        %380 = vmatprep.subr.mxu0 0.0
        %381 = vmatpush1.msra.mxu0 0.0
        %382 = vmatprep.subr.mxu0 0.0
        %383 = vmatpush1.msra.mxu0 0.0
        %384 = vmatprep.subr.mxu0 0.0
        %385 = vmatpush1.msra.mxu0 0.0
        %386 = vmatprep.subr.mxu0 0.0
        %387 = vmatpush1.msra.mxu0 0.0
        %388 = vmatprep.subr.mxu0 0.0
        %389 = vmatpush1.msra.mxu0 0.0
        %390 = vmatprep.subr.mxu0 0.0
        %391 = vmatpush1.msra.mxu0 0.0
        %392 = vmatprep.subr.mxu0 0.0
        %393 = vmatpush1.msra.mxu0 0.0
        %394 = vmatprep.subr.mxu0 0.0
        %395 = vmatpush1.msra.mxu0 0.0
        %396 = vmatprep.subr.mxu0 0.0
        %397 = vmatpush1.msra.mxu0 0.0
        %398 = vmatprep.subr.mxu0 0.0
        %399 = vmatpush1.msra.mxu0 0.0
        %400 = vmatprep.subr.mxu0 0.0
        %401 = vmatpush1.msra.mxu0 0.0
        %402 = vmatprep.subr.mxu0 0.0
        %403 = vmatpush1.msra.mxu0 0.0
        %404 = vmatprep.subr.mxu0 0.0
        %405 = vmatpush1.msra.mxu0 0.0
        %406 = vmatprep.subr.mxu0 0.0
        %407 = vmatpush1.msra.mxu0 0.0
        %408 = vmatprep.subr.mxu0 0.0
        %409 = vmatpush1.msra.mxu0 0.0
        %410 = vmatprep.subr.mxu0 0.0
        %411 = vmatpush1.msra.mxu0 0.0
        %412 = vmatprep.subr.mxu0 0.0
        %413 = vmatpush1.msra.mxu0 0.0
        %414 = vmatprep.subr.mxu0 0.0
        %415 = vmatpush1.msra.mxu0 0.0
        %416 = vmatprep.subr.mxu0 0.0
        %417 = vmatpush1.msra.mxu0 0.0
        %418 = vmatprep.subr.mxu0 0.0
        %419 = vmatpush1.msra.mxu0 0.0
        %420 = vmatprep.subr.mxu0 0.0
        %421 = vmatpush1.msra.mxu0 0.0
        %422 = vmatprep.subr.mxu0 0.0
        %423 = vmatpush1.msra.mxu0 0.0
        %424 = vmatprep.subr.mxu0 0.0
        %425 = vmatpush1.msra.mxu0 0.0
        %426 = vmatprep.subr.mxu0 0.0
        %427 = vmatpush1.msra.mxu0 0.0
        %428 = vmatprep.mubr.f32.mxu0 0.0
        %429 = vmatmul.mubr.f32.gmra.mrb[0].mxu0 %v362
        %v430 = vpop.f32.mrb[0].mxu0
        %v431 = vadd.f32 %v357, %v430
        %v432 = vpop.f32.mrb[0].mxu0
        %v433 = vadd.f32 %v359, %v432
        %434 = vdwg.mxu0
        %435 = vrot.lane.b32.xlu0 %v252, 15
        %v436 = vpop.permute.xlu0 %435
        %437 = vrot.lane.b32.xlu0 %v253, 15
        %v438 = vpop.permute.xlu0 %437
        %vm439 = vcmp.lt.s32.totalorder %v259, 15
        %v440 = vsel %vm439, %v436, %v438
        %v441 = vsel %vm439, %v438, %v436
        %s442 = scalar_lea.vmem %s5, 32
        %v443 = vld [vmem:[%s442] sm:$0xff]
        %v444 = vld [vmem:[%s442 + $0x8] sm:$0xff]
        %vm445 = vcmp.gt.f32.partialorder %v443, 0.5
        %vm446 = vcmp.gt.f32.partialorder %v444, 0.5
        %v447 = vsel %vm445, %v441, 0.0
        %v448 = vsel %vm446, %v440, 0.0
        %s449 = scalar_lea.vmem %s1, 16
        %v450 = vld [vmem:[%s449] sm:$0xff]
        %v452 = vsel %vm286, %v450, 0
        %454 = vmatprep.subr.mxu0 %v448
        %455 = vmatpush1.msra.mxu0 %v447
        %456 = vmatprep.subr.mxu0 0.0
        %457 = vmatpush1.msra.mxu0 0.0
        %458 = vmatprep.subr.mxu0 0.0
        %459 = vmatpush1.msra.mxu0 0.0
        %460 = vmatprep.subr.mxu0 0.0
        %461 = vmatpush1.msra.mxu0 0.0
        %462 = vmatprep.subr.mxu0 0.0
        %463 = vmatpush1.msra.mxu0 0.0
        %464 = vmatprep.subr.mxu0 0.0
        %465 = vmatpush1.msra.mxu0 0.0
        %466 = vmatprep.subr.mxu0 0.0
        %467 = vmatpush1.msra.mxu0 0.0
        %468 = vmatprep.subr.mxu0 0.0
        %469 = vmatpush1.msra.mxu0 0.0
        %470 = vmatprep.subr.mxu0 0.0
        %471 = vmatpush1.msra.mxu0 0.0
        %472 = vmatprep.subr.mxu0 0.0
        %473 = vmatpush1.msra.mxu0 0.0
        %474 = vmatprep.subr.mxu0 0.0
        %475 = vmatpush1.msra.mxu0 0.0
        %476 = vmatprep.subr.mxu0 0.0
        %477 = vmatpush1.msra.mxu0 0.0
        %478 = vmatprep.subr.mxu0 0.0
        %479 = vmatpush1.msra.mxu0 0.0
        %480 = vmatprep.subr.mxu0 0.0
        %481 = vmatpush1.msra.mxu0 0.0
        %482 = vmatprep.subr.mxu0 0.0
        %483 = vmatpush1.msra.mxu0 0.0
        %484 = vmatprep.subr.mxu0 0.0
        %485 = vmatpush1.msra.mxu0 0.0
        %486 = vmatprep.subr.mxu0 0.0
        %487 = vmatpush1.msra.mxu0 0.0
        %488 = vmatprep.subr.mxu0 0.0
        %489 = vmatpush1.msra.mxu0 0.0
        %490 = vmatprep.subr.mxu0 0.0
        %491 = vmatpush1.msra.mxu0 0.0
        %492 = vmatprep.subr.mxu0 0.0
        %493 = vmatpush1.msra.mxu0 0.0
        %494 = vmatprep.subr.mxu0 0.0
        %495 = vmatpush1.msra.mxu0 0.0
        %496 = vmatprep.subr.mxu0 0.0
        %497 = vmatpush1.msra.mxu0 0.0
        %498 = vmatprep.subr.mxu0 0.0
        %499 = vmatpush1.msra.mxu0 0.0
        %500 = vmatprep.subr.mxu0 0.0
        %501 = vmatpush1.msra.mxu0 0.0
        %502 = vmatprep.subr.mxu0 0.0
        %503 = vmatpush1.msra.mxu0 0.0
        %504 = vmatprep.subr.mxu0 0.0
        %505 = vmatpush1.msra.mxu0 0.0
        %506 = vmatprep.subr.mxu0 0.0
        %507 = vmatpush1.msra.mxu0 0.0
        %508 = vmatprep.subr.mxu0 0.0
        %509 = vmatpush1.msra.mxu0 0.0
        %510 = vmatprep.subr.mxu0 0.0
        %511 = vmatpush1.msra.mxu0 0.0
        %512 = vmatprep.subr.mxu0 0.0
        %513 = vmatpush1.msra.mxu0 0.0
        %514 = vmatprep.subr.mxu0 0.0
        %515 = vmatpush1.msra.mxu0 0.0
        %516 = vmatprep.subr.mxu0 0.0
        %517 = vmatpush1.msra.mxu0 0.0
        %518 = vmatprep.mubr.f32.mxu0 0.0
        %519 = vmatmul.mubr.f32.gmra.mrb[0].mxu0 %v452
        %v520 = vpop.f32.mrb[0].mxu0
        %v521 = vadd.f32 0.0, %v520
        %v522 = vpop.f32.mrb[0].mxu0
        %v523 = vadd.f32 0.0, %v522
        %524 = vdwg.mxu0
        %v525 = vadd.f32 %v431, %v521
        %v526 = vadd.f32 %v433, %v523
        %527 = vrot.lane.b32.xlu0 %v252, 1
        %v528 = vpop.permute.xlu0 %527
        %529 = vrot.lane.b32.xlu0 %v253, 1
        %v530 = vpop.permute.xlu0 %529
        %vm531 = vcmp.lt.s32.totalorder %v259, 1
        %v532 = vsel %vm531, %v528, %v530
        %v533 = vsel %vm531, %v530, %v528
        %s534 = scalar_lea.vmem %s5, 48
        %v535 = vld [vmem:[%s534] sm:$0xff]
        %v536 = vld [vmem:[%s534 + $0x8] sm:$0xff]
        %vm537 = vcmp.gt.f32.partialorder %v535, 0.5
        %vm538 = vcmp.gt.f32.partialorder %v536, 0.5
        %v539 = vsel %vm537, %v533, 0.0
        %v540 = vsel %vm538, %v532, 0.0
        %s541 = scalar_lea.vmem %s1, 24
        %v542 = vld [vmem:[%s541] sm:$0xff]
        %v544 = vsel %vm286, %v542, 0
        %546 = vmatprep.subr.mxu0 %v540
        %547 = vmatpush1.msra.mxu0 %v539
        %548 = vmatprep.subr.mxu0 0.0
        %549 = vmatpush1.msra.mxu0 0.0
        %550 = vmatprep.subr.mxu0 0.0
        %551 = vmatpush1.msra.mxu0 0.0
        %552 = vmatprep.subr.mxu0 0.0
        %553 = vmatpush1.msra.mxu0 0.0
        %554 = vmatprep.subr.mxu0 0.0
        %555 = vmatpush1.msra.mxu0 0.0
        %556 = vmatprep.subr.mxu0 0.0
        %557 = vmatpush1.msra.mxu0 0.0
        %558 = vmatprep.subr.mxu0 0.0
        %559 = vmatpush1.msra.mxu0 0.0
        %560 = vmatprep.subr.mxu0 0.0
        %561 = vmatpush1.msra.mxu0 0.0
        %562 = vmatprep.subr.mxu0 0.0
        %563 = vmatpush1.msra.mxu0 0.0
        %564 = vmatprep.subr.mxu0 0.0
        %565 = vmatpush1.msra.mxu0 0.0
        %566 = vmatprep.subr.mxu0 0.0
        %567 = vmatpush1.msra.mxu0 0.0
        %568 = vmatprep.subr.mxu0 0.0
        %569 = vmatpush1.msra.mxu0 0.0
        %570 = vmatprep.subr.mxu0 0.0
        %571 = vmatpush1.msra.mxu0 0.0
        %572 = vmatprep.subr.mxu0 0.0
        %573 = vmatpush1.msra.mxu0 0.0
        %574 = vmatprep.subr.mxu0 0.0
        %575 = vmatpush1.msra.mxu0 0.0
        %576 = vmatprep.subr.mxu0 0.0
        %577 = vmatpush1.msra.mxu0 0.0
        %578 = vmatprep.subr.mxu0 0.0
        %579 = vmatpush1.msra.mxu0 0.0
        %580 = vmatprep.subr.mxu0 0.0
        %581 = vmatpush1.msra.mxu0 0.0
        %582 = vmatprep.subr.mxu0 0.0
        %583 = vmatpush1.msra.mxu0 0.0
        %584 = vmatprep.subr.mxu0 0.0
        %585 = vmatpush1.msra.mxu0 0.0
        %586 = vmatprep.subr.mxu0 0.0
        %587 = vmatpush1.msra.mxu0 0.0
        %588 = vmatprep.subr.mxu0 0.0
        %589 = vmatpush1.msra.mxu0 0.0
        %590 = vmatprep.subr.mxu0 0.0
        %591 = vmatpush1.msra.mxu0 0.0
        %592 = vmatprep.subr.mxu0 0.0
        %593 = vmatpush1.msra.mxu0 0.0
        %594 = vmatprep.subr.mxu0 0.0
        %595 = vmatpush1.msra.mxu0 0.0
        %596 = vmatprep.subr.mxu0 0.0
        %597 = vmatpush1.msra.mxu0 0.0
        %598 = vmatprep.subr.mxu0 0.0
        %599 = vmatpush1.msra.mxu0 0.0
        %600 = vmatprep.subr.mxu0 0.0
        %601 = vmatpush1.msra.mxu0 0.0
        %602 = vmatprep.subr.mxu0 0.0
        %603 = vmatpush1.msra.mxu0 0.0
        %604 = vmatprep.subr.mxu0 0.0
        %605 = vmatpush1.msra.mxu0 0.0
        %606 = vmatprep.subr.mxu0 0.0
        %607 = vmatpush1.msra.mxu0 0.0
        %608 = vmatprep.subr.mxu0 0.0
        %609 = vmatpush1.msra.mxu0 0.0
        %610 = vmatprep.mubr.f32.mxu0 0.0
        %611 = vmatmul.mubr.f32.gmra.mrb[0].mxu0 %v544
        %v612 = vpop.f32.mrb[0].mxu0
        %v613 = vadd.f32 0.0, %v612
        %v614 = vpop.f32.mrb[0].mxu0
        %v615 = vadd.f32 0.0, %v614
        %616 = vdwg.mxu0
        %v617 = vadd.f32 %v525, %v613
        %v618 = vadd.f32 %v526, %v615
        %s619 = scalar_lea.vmem %s5, 64
        %v620 = vld [vmem:[%s619] sm:$0xff]
        %v621 = vld [vmem:[%s619 + $0x8] sm:$0xff]
        %vm622 = vcmp.gt.f32.partialorder %v620, 0.5
        %vm623 = vcmp.gt.f32.partialorder %v621, 0.5
        %v624 = vsel %vm622, %v252, 0.0
        %v625 = vsel %vm623, %v253, 0.0
        %s626 = scalar_lea.vmem %s1, 32
        %v627 = vld [vmem:[%s626] sm:$0xff]
        %v629 = vsel %vm286, %v627, 0
        %631 = vmatprep.subr.mxu0 %v625
        %632 = vmatpush1.msra.mxu0 %v624
        %633 = vmatprep.subr.mxu0 0.0
        %634 = vmatpush1.msra.mxu0 0.0
        %635 = vmatprep.subr.mxu0 0.0
        %636 = vmatpush1.msra.mxu0 0.0
        %637 = vmatprep.subr.mxu0 0.0
        %638 = vmatpush1.msra.mxu0 0.0
        %639 = vmatprep.subr.mxu0 0.0
        %640 = vmatpush1.msra.mxu0 0.0
        %641 = vmatprep.subr.mxu0 0.0
        %642 = vmatpush1.msra.mxu0 0.0
        %643 = vmatprep.subr.mxu0 0.0
        %644 = vmatpush1.msra.mxu0 0.0
        %645 = vmatprep.subr.mxu0 0.0
        %646 = vmatpush1.msra.mxu0 0.0
        %647 = vmatprep.subr.mxu0 0.0
        %648 = vmatpush1.msra.mxu0 0.0
        %649 = vmatprep.subr.mxu0 0.0
        %650 = vmatpush1.msra.mxu0 0.0
        %651 = vmatprep.subr.mxu0 0.0
        %652 = vmatpush1.msra.mxu0 0.0
        %653 = vmatprep.subr.mxu0 0.0
        %654 = vmatpush1.msra.mxu0 0.0
        %655 = vmatprep.subr.mxu0 0.0
        %656 = vmatpush1.msra.mxu0 0.0
        %657 = vmatprep.subr.mxu0 0.0
        %658 = vmatpush1.msra.mxu0 0.0
        %659 = vmatprep.subr.mxu0 0.0
        %660 = vmatpush1.msra.mxu0 0.0
        %661 = vmatprep.subr.mxu0 0.0
        %662 = vmatpush1.msra.mxu0 0.0
        %663 = vmatprep.subr.mxu0 0.0
        %664 = vmatpush1.msra.mxu0 0.0
        %665 = vmatprep.subr.mxu0 0.0
        %666 = vmatpush1.msra.mxu0 0.0
        %667 = vmatprep.subr.mxu0 0.0
        %668 = vmatpush1.msra.mxu0 0.0
        %669 = vmatprep.subr.mxu0 0.0
        %670 = vmatpush1.msra.mxu0 0.0
        %671 = vmatprep.subr.mxu0 0.0
        %672 = vmatpush1.msra.mxu0 0.0
        %673 = vmatprep.subr.mxu0 0.0
        %674 = vmatpush1.msra.mxu0 0.0
        %675 = vmatprep.subr.mxu0 0.0
        %676 = vmatpush1.msra.mxu0 0.0
        %677 = vmatprep.subr.mxu0 0.0
        %678 = vmatpush1.msra.mxu0 0.0
        %679 = vmatprep.subr.mxu0 0.0
        %680 = vmatpush1.msra.mxu0 0.0
        %681 = vmatprep.subr.mxu0 0.0
        %682 = vmatpush1.msra.mxu0 0.0
        %683 = vmatprep.subr.mxu0 0.0
        %684 = vmatpush1.msra.mxu0 0.0
        %685 = vmatprep.subr.mxu0 0.0
        %686 = vmatpush1.msra.mxu0 0.0
        %687 = vmatprep.subr.mxu0 0.0
        %688 = vmatpush1.msra.mxu0 0.0
        %689 = vmatprep.subr.mxu0 0.0
        %690 = vmatpush1.msra.mxu0 0.0
        %691 = vmatprep.subr.mxu0 0.0
        %692 = vmatpush1.msra.mxu0 0.0
        %693 = vmatprep.subr.mxu0 0.0
        %694 = vmatpush1.msra.mxu0 0.0
        %695 = vmatprep.mubr.f32.mxu0 0.0
        %696 = vmatmul.mubr.f32.gmra.mrb[0].mxu0 %v629
        %v697 = vpop.f32.mrb[0].mxu0
        %v698 = vadd.f32 0.0, %v697
        %v699 = vpop.f32.mrb[0].mxu0
        %v700 = vadd.f32 0.0, %v699
        %701 = vdwg.mxu0
        %v702 = vadd.f32 %v617, %v698
        %v703 = vadd.f32 %v618, %v700
        %704 = vrot.lane.b32.xlu0 %v252, 127
        %v705 = vpop.permute.xlu0 %704
        %706 = vrot.lane.b32.xlu0 %v253, 127
        %v707 = vpop.permute.xlu0 %706
        %vm708 = vcmp.lt.s32.totalorder %v259, 127
        %v709 = vsel %vm708, %v705, %v707
        %v710 = vsel %vm708, %v707, %v705
        %s711 = scalar_lea.vmem %s5, 80
        %v712 = vld [vmem:[%s711] sm:$0xff]
        %v713 = vld [vmem:[%s711 + $0x8] sm:$0xff]
        %vm714 = vcmp.gt.f32.partialorder %v712, 0.5
        %vm715 = vcmp.gt.f32.partialorder %v713, 0.5
        %v716 = vsel %vm714, %v709, 0.0
        %v717 = vsel %vm715, %v710, 0.0
        %s718 = scalar_lea.vmem %s1, 40
        %v719 = vld [vmem:[%s718] sm:$0xff]
        %v721 = vsel %vm286, %v719, 0
        %723 = vmatprep.subr.mxu0 %v717
        %724 = vmatpush1.msra.mxu0 %v716
        %725 = vmatprep.subr.mxu0 0.0
        %726 = vmatpush1.msra.mxu0 0.0
        %727 = vmatprep.subr.mxu0 0.0
        %728 = vmatpush1.msra.mxu0 0.0
        %729 = vmatprep.subr.mxu0 0.0
        %730 = vmatpush1.msra.mxu0 0.0
        %731 = vmatprep.subr.mxu0 0.0
        %732 = vmatpush1.msra.mxu0 0.0
        %733 = vmatprep.subr.mxu0 0.0
        %734 = vmatpush1.msra.mxu0 0.0
        %735 = vmatprep.subr.mxu0 0.0
        %736 = vmatpush1.msra.mxu0 0.0
        %737 = vmatprep.subr.mxu0 0.0
        %738 = vmatpush1.msra.mxu0 0.0
        %739 = vmatprep.subr.mxu0 0.0
        %740 = vmatpush1.msra.mxu0 0.0
        %741 = vmatprep.subr.mxu0 0.0
        %742 = vmatpush1.msra.mxu0 0.0
        %743 = vmatprep.subr.mxu0 0.0
        %744 = vmatpush1.msra.mxu0 0.0
        %745 = vmatprep.subr.mxu0 0.0
        %746 = vmatpush1.msra.mxu0 0.0
        %747 = vmatprep.subr.mxu0 0.0
        %748 = vmatpush1.msra.mxu0 0.0
        %749 = vmatprep.subr.mxu0 0.0
        %750 = vmatpush1.msra.mxu0 0.0
        %751 = vmatprep.subr.mxu0 0.0
        %752 = vmatpush1.msra.mxu0 0.0
        %753 = vmatprep.subr.mxu0 0.0
        %754 = vmatpush1.msra.mxu0 0.0
        %755 = vmatprep.subr.mxu0 0.0
        %756 = vmatpush1.msra.mxu0 0.0
        %757 = vmatprep.subr.mxu0 0.0
        %758 = vmatpush1.msra.mxu0 0.0
        %759 = vmatprep.subr.mxu0 0.0
        %760 = vmatpush1.msra.mxu0 0.0
        %761 = vmatprep.subr.mxu0 0.0
        %762 = vmatpush1.msra.mxu0 0.0
        %763 = vmatprep.subr.mxu0 0.0
        %764 = vmatpush1.msra.mxu0 0.0
        %765 = vmatprep.subr.mxu0 0.0
        %766 = vmatpush1.msra.mxu0 0.0
        %767 = vmatprep.subr.mxu0 0.0
        %768 = vmatpush1.msra.mxu0 0.0
        %769 = vmatprep.subr.mxu0 0.0
        %770 = vmatpush1.msra.mxu0 0.0
        %771 = vmatprep.subr.mxu0 0.0
        %772 = vmatpush1.msra.mxu0 0.0
        %773 = vmatprep.subr.mxu0 0.0
        %774 = vmatpush1.msra.mxu0 0.0
        %775 = vmatprep.subr.mxu0 0.0
        %776 = vmatpush1.msra.mxu0 0.0
        %777 = vmatprep.subr.mxu0 0.0
        %778 = vmatpush1.msra.mxu0 0.0
        %779 = vmatprep.subr.mxu0 0.0
        %780 = vmatpush1.msra.mxu0 0.0
        %781 = vmatprep.subr.mxu0 0.0
        %782 = vmatpush1.msra.mxu0 0.0
        %783 = vmatprep.subr.mxu0 0.0
        %784 = vmatpush1.msra.mxu0 0.0
        %785 = vmatprep.subr.mxu0 0.0
        %786 = vmatpush1.msra.mxu0 0.0
        %787 = vmatprep.mubr.f32.mxu0 0.0
        %788 = vmatmul.mubr.f32.gmra.mrb[0].mxu0 %v721
        %v789 = vpop.f32.mrb[0].mxu0
        %v790 = vadd.f32 0.0, %v789
        %v791 = vpop.f32.mrb[0].mxu0
        %v792 = vadd.f32 0.0, %v791
        %793 = vdwg.mxu0
        %v794 = vadd.f32 %v702, %v790
        %v795 = vadd.f32 %v703, %v792
        %796 = vrot.lane.b32.xlu0 %v252, 113
        %v797 = vpop.permute.xlu0 %796
        %798 = vrot.lane.b32.xlu0 %v253, 113
        %v799 = vpop.permute.xlu0 %798
        %vm800 = vcmp.lt.s32.totalorder %v259, 113
        %v801 = vsel %vm800, %v797, %v799
        %v802 = vsel %vm800, %v799, %v797
        %s803 = scalar_lea.vmem %s5, 96
        %v804 = vld [vmem:[%s803] sm:$0xff]
        %v805 = vld [vmem:[%s803 + $0x8] sm:$0xff]
        %vm806 = vcmp.gt.f32.partialorder %v804, 0.5
        %vm807 = vcmp.gt.f32.partialorder %v805, 0.5
        %v808 = vsel %vm806, %v801, 0.0
        %v809 = vsel %vm807, %v802, 0.0
        %s810 = scalar_lea.vmem %s1, 48
        %v811 = vld [vmem:[%s810] sm:$0xff]
        %v813 = vsel %vm286, %v811, 0
        %815 = vmatprep.subr.mxu0 %v809
        %816 = vmatpush1.msra.mxu0 %v808
        %817 = vmatprep.subr.mxu0 0.0
        %818 = vmatpush1.msra.mxu0 0.0
        %819 = vmatprep.subr.mxu0 0.0
        %820 = vmatpush1.msra.mxu0 0.0
        %821 = vmatprep.subr.mxu0 0.0
        %822 = vmatpush1.msra.mxu0 0.0
        %823 = vmatprep.subr.mxu0 0.0
        %824 = vmatpush1.msra.mxu0 0.0
        %825 = vmatprep.subr.mxu0 0.0
        %826 = vmatpush1.msra.mxu0 0.0
        %827 = vmatprep.subr.mxu0 0.0
        %828 = vmatpush1.msra.mxu0 0.0
        %829 = vmatprep.subr.mxu0 0.0
        %830 = vmatpush1.msra.mxu0 0.0
        %831 = vmatprep.subr.mxu0 0.0
        %832 = vmatpush1.msra.mxu0 0.0
        %833 = vmatprep.subr.mxu0 0.0
        %834 = vmatpush1.msra.mxu0 0.0
        %835 = vmatprep.subr.mxu0 0.0
        %836 = vmatpush1.msra.mxu0 0.0
        %837 = vmatprep.subr.mxu0 0.0
        %838 = vmatpush1.msra.mxu0 0.0
        %839 = vmatprep.subr.mxu0 0.0
        %840 = vmatpush1.msra.mxu0 0.0
        %841 = vmatprep.subr.mxu0 0.0
        %842 = vmatpush1.msra.mxu0 0.0
        %843 = vmatprep.subr.mxu0 0.0
        %844 = vmatpush1.msra.mxu0 0.0
        %845 = vmatprep.subr.mxu0 0.0
        %846 = vmatpush1.msra.mxu0 0.0
        %847 = vmatprep.subr.mxu0 0.0
        %848 = vmatpush1.msra.mxu0 0.0
        %849 = vmatprep.subr.mxu0 0.0
        %850 = vmatpush1.msra.mxu0 0.0
        %851 = vmatprep.subr.mxu0 0.0
        %852 = vmatpush1.msra.mxu0 0.0
        %853 = vmatprep.subr.mxu0 0.0
        %854 = vmatpush1.msra.mxu0 0.0
        %855 = vmatprep.subr.mxu0 0.0
        %856 = vmatpush1.msra.mxu0 0.0
        %857 = vmatprep.subr.mxu0 0.0
        %858 = vmatpush1.msra.mxu0 0.0
        %859 = vmatprep.subr.mxu0 0.0
        %860 = vmatpush1.msra.mxu0 0.0
        %861 = vmatprep.subr.mxu0 0.0
        %862 = vmatpush1.msra.mxu0 0.0
        %863 = vmatprep.subr.mxu0 0.0
        %864 = vmatpush1.msra.mxu0 0.0
        %865 = vmatprep.subr.mxu0 0.0
        %866 = vmatpush1.msra.mxu0 0.0
        %867 = vmatprep.subr.mxu0 0.0
        %868 = vmatpush1.msra.mxu0 0.0
        %869 = vmatprep.subr.mxu0 0.0
        %870 = vmatpush1.msra.mxu0 0.0
        %871 = vmatprep.subr.mxu0 0.0
        %872 = vmatpush1.msra.mxu0 0.0
        %873 = vmatprep.subr.mxu0 0.0
        %874 = vmatpush1.msra.mxu0 0.0
        %875 = vmatprep.subr.mxu0 0.0
        %876 = vmatpush1.msra.mxu0 0.0
        %877 = vmatprep.subr.mxu0 0.0
        %878 = vmatpush1.msra.mxu0 0.0
        %879 = vmatprep.mubr.f32.mxu0 0.0
        %880 = vmatmul.mubr.f32.gmra.mrb[0].mxu0 %v813
        %v881 = vpop.f32.mrb[0].mxu0
        %v882 = vadd.f32 0.0, %v881
        %v883 = vpop.f32.mrb[0].mxu0
        %v884 = vadd.f32 0.0, %v883
        %885 = vdwg.mxu0
        %v886 = vadd.f32 %v794, %v882
        %v887 = vadd.f32 %v795, %v884
        %888 = vrot.lane.b32.xlu0 %v252, 112
        %v889 = vpop.permute.xlu0 %888
        %890 = vrot.lane.b32.xlu0 %v253, 112
        %v891 = vpop.permute.xlu0 %890
        %vm892 = vcmp.lt.s32.totalorder %v259, 112
        %v893 = vsel %vm892, %v889, %v891
        %v894 = vsel %vm892, %v891, %v889
        %s895 = scalar_lea.vmem %s5, 112
        %v896 = vld [vmem:[%s895] sm:$0xff]
        %v897 = vld [vmem:[%s895 + $0x8] sm:$0xff]
        %vm898 = vcmp.gt.f32.partialorder %v896, 0.5
        %vm899 = vcmp.gt.f32.partialorder %v897, 0.5
        %v900 = vsel %vm898, %v893, 0.0
        %v901 = vsel %vm899, %v894, 0.0
        %s902 = scalar_lea.vmem %s1, 56
        %v903 = vld [vmem:[%s902] sm:$0xff]
        %v905 = vsel %vm286, %v903, 0
        %907 = vmatprep.subr.mxu0 %v901
        %908 = vmatpush1.msra.mxu0 %v900
        %909 = vmatprep.subr.mxu0 0.0
        %910 = vmatpush1.msra.mxu0 0.0
        %911 = vmatprep.subr.mxu0 0.0
        %912 = vmatpush1.msra.mxu0 0.0
        %913 = vmatprep.subr.mxu0 0.0
        %914 = vmatpush1.msra.mxu0 0.0
        %915 = vmatprep.subr.mxu0 0.0
        %916 = vmatpush1.msra.mxu0 0.0
        %917 = vmatprep.subr.mxu0 0.0
        %918 = vmatpush1.msra.mxu0 0.0
        %919 = vmatprep.subr.mxu0 0.0
        %920 = vmatpush1.msra.mxu0 0.0
        %921 = vmatprep.subr.mxu0 0.0
        %922 = vmatpush1.msra.mxu0 0.0
        %923 = vmatprep.subr.mxu0 0.0
        %924 = vmatpush1.msra.mxu0 0.0
        %925 = vmatprep.subr.mxu0 0.0
        %926 = vmatpush1.msra.mxu0 0.0
        %927 = vmatprep.subr.mxu0 0.0
        %928 = vmatpush1.msra.mxu0 0.0
        %929 = vmatprep.subr.mxu0 0.0
        %930 = vmatpush1.msra.mxu0 0.0
        %931 = vmatprep.subr.mxu0 0.0
        %932 = vmatpush1.msra.mxu0 0.0
        %933 = vmatprep.subr.mxu0 0.0
        %934 = vmatpush1.msra.mxu0 0.0
        %935 = vmatprep.subr.mxu0 0.0
        %936 = vmatpush1.msra.mxu0 0.0
        %937 = vmatprep.subr.mxu0 0.0
        %938 = vmatpush1.msra.mxu0 0.0
        %939 = vmatprep.subr.mxu0 0.0
        %940 = vmatpush1.msra.mxu0 0.0
        %941 = vmatprep.subr.mxu0 0.0
        %942 = vmatpush1.msra.mxu0 0.0
        %943 = vmatprep.subr.mxu0 0.0
        %944 = vmatpush1.msra.mxu0 0.0
        %945 = vmatprep.subr.mxu0 0.0
        %946 = vmatpush1.msra.mxu0 0.0
        %947 = vmatprep.subr.mxu0 0.0
        %948 = vmatpush1.msra.mxu0 0.0
        %949 = vmatprep.subr.mxu0 0.0
        %950 = vmatpush1.msra.mxu0 0.0
        %951 = vmatprep.subr.mxu0 0.0
        %952 = vmatpush1.msra.mxu0 0.0
        %953 = vmatprep.subr.mxu0 0.0
        %954 = vmatpush1.msra.mxu0 0.0
        %955 = vmatprep.subr.mxu0 0.0
        %956 = vmatpush1.msra.mxu0 0.0
        %957 = vmatprep.subr.mxu0 0.0
        %958 = vmatpush1.msra.mxu0 0.0
        %959 = vmatprep.subr.mxu0 0.0
        %960 = vmatpush1.msra.mxu0 0.0
        %961 = vmatprep.subr.mxu0 0.0
        %962 = vmatpush1.msra.mxu0 0.0
        %963 = vmatprep.subr.mxu0 0.0
        %964 = vmatpush1.msra.mxu0 0.0
        %965 = vmatprep.subr.mxu0 0.0
        %966 = vmatpush1.msra.mxu0 0.0
        %967 = vmatprep.subr.mxu0 0.0
        %968 = vmatpush1.msra.mxu0 0.0
        %969 = vmatprep.subr.mxu0 0.0
        %970 = vmatpush1.msra.mxu0 0.0
        %971 = vmatprep.mubr.f32.mxu0 0.0
        %972 = vmatmul.mubr.f32.gmra.mrb[0].mxu0 %v905
        %v973 = vpop.f32.mrb[0].mxu0
        %v974 = vadd.f32 0.0, %v973
        %v975 = vpop.f32.mrb[0].mxu0
        %v976 = vadd.f32 0.0, %v975
        %977 = vdwg.mxu0
        %v978 = vadd.f32 %v886, %v974
        %v979 = vadd.f32 %v887, %v976
        %980 = vrot.lane.b32.xlu0 %v252, 111
        %v981 = vpop.permute.xlu0 %980
        %982 = vrot.lane.b32.xlu0 %v253, 111
        %v983 = vpop.permute.xlu0 %982
        %vm984 = vcmp.lt.s32.totalorder %v259, 111
        %v985 = vsel %vm984, %v981, %v983
        %v986 = vsel %vm984, %v983, %v981
        %s987 = scalar_lea.vmem %s5, 128
        %v988 = vld [vmem:[%s987] sm:$0xff]
        %v989 = vld [vmem:[%s987 + $0x8] sm:$0xff]
        %vm990 = vcmp.gt.f32.partialorder %v988, 0.5
        %vm991 = vcmp.gt.f32.partialorder %v989, 0.5
        %v992 = vsel %vm990, %v985, 0.0
        %v993 = vsel %vm991, %v986, 0.0
        %s994 = scalar_lea.vmem %s1, 64
        %v995 = vld [vmem:[%s994] sm:$0xff]
        %v997 = vsel %vm286, %v995, 0
        %999 = vmatprep.subr.mxu0 %v993
        %1000 = vmatpush1.msra.mxu0 %v992
        %1001 = vmatprep.subr.mxu0 0.0
        %1002 = vmatpush1.msra.mxu0 0.0
        %1003 = vmatprep.subr.mxu0 0.0
        %1004 = vmatpush1.msra.mxu0 0.0
        %1005 = vmatprep.subr.mxu0 0.0
        %1006 = vmatpush1.msra.mxu0 0.0
        %1007 = vmatprep.subr.mxu0 0.0
        %1008 = vmatpush1.msra.mxu0 0.0
        %1009 = vmatprep.subr.mxu0 0.0
        %1010 = vmatpush1.msra.mxu0 0.0
        %1011 = vmatprep.subr.mxu0 0.0
        %1012 = vmatpush1.msra.mxu0 0.0
        %1013 = vmatprep.subr.mxu0 0.0
        %1014 = vmatpush1.msra.mxu0 0.0
        %1015 = vmatprep.subr.mxu0 0.0
        %1016 = vmatpush1.msra.mxu0 0.0
        %1017 = vmatprep.subr.mxu0 0.0
        %1018 = vmatpush1.msra.mxu0 0.0
        %1019 = vmatprep.subr.mxu0 0.0
        %1020 = vmatpush1.msra.mxu0 0.0
        %1021 = vmatprep.subr.mxu0 0.0
        %1022 = vmatpush1.msra.mxu0 0.0
        %1023 = vmatprep.subr.mxu0 0.0
        %1024 = vmatpush1.msra.mxu0 0.0
        %1025 = vmatprep.subr.mxu0 0.0
        %1026 = vmatpush1.msra.mxu0 0.0
        %1027 = vmatprep.subr.mxu0 0.0
        %1028 = vmatpush1.msra.mxu0 0.0
        %1029 = vmatprep.subr.mxu0 0.0
        %1030 = vmatpush1.msra.mxu0 0.0
        %1031 = vmatprep.subr.mxu0 0.0
        %1032 = vmatpush1.msra.mxu0 0.0
        %1033 = vmatprep.subr.mxu0 0.0
        %1034 = vmatpush1.msra.mxu0 0.0
        %1035 = vmatprep.subr.mxu0 0.0
        %1036 = vmatpush1.msra.mxu0 0.0
        %1037 = vmatprep.subr.mxu0 0.0
        %1038 = vmatpush1.msra.mxu0 0.0
        %1039 = vmatprep.subr.mxu0 0.0
        %1040 = vmatpush1.msra.mxu0 0.0
        %1041 = vmatprep.subr.mxu0 0.0
        %1042 = vmatpush1.msra.mxu0 0.0
        %1043 = vmatprep.subr.mxu0 0.0
        %1044 = vmatpush1.msra.mxu0 0.0
        %1045 = vmatprep.subr.mxu0 0.0
        %1046 = vmatpush1.msra.mxu0 0.0
        %1047 = vmatprep.subr.mxu0 0.0
        %1048 = vmatpush1.msra.mxu0 0.0
        %1049 = vmatprep.subr.mxu0 0.0
        %1050 = vmatpush1.msra.mxu0 0.0
        %1051 = vmatprep.subr.mxu0 0.0
        %1052 = vmatpush1.msra.mxu0 0.0
        %1053 = vmatprep.subr.mxu0 0.0
        %1054 = vmatpush1.msra.mxu0 0.0
        %1055 = vmatprep.subr.mxu0 0.0
        %1056 = vmatpush1.msra.mxu0 0.0
        %1057 = vmatprep.subr.mxu0 0.0
        %1058 = vmatpush1.msra.mxu0 0.0
        %1059 = vmatprep.subr.mxu0 0.0
        %1060 = vmatpush1.msra.mxu0 0.0
        %1061 = vmatprep.subr.mxu0 0.0
        %1062 = vmatpush1.msra.mxu0 0.0
        %1063 = vmatprep.mubr.f32.mxu0 0.0
        %1064 = vmatmul.mubr.f32.gmra.mrb[0].mxu0 %v997
        %v1065 = vpop.f32.mrb[0].mxu0
        %v1066 = vadd.f32 0.0, %v1065
        %v1067 = vpop.f32.mrb[0].mxu0
        %v1068 = vadd.f32 0.0, %v1067
        %1069 = vdwg.mxu0
        %v1070 = vadd.f32 %v978, %v1066
        %v1071 = vadd.f32 %v979, %v1068
        %1073 = vset.pattern.permute.xlu0 0
        %1074 = vperm.xlu0 %1073, %v250
        %v1075 = vpop.permute.xlu0 %1074
        %v1077 = vadd.f32 %v1070, %v1075
        %v1078 = vadd.f32 %v1071, %v1075
        %vm1079 = vcmp.gt.f32.partialorder %v1077, 0.0
        %vm1080 = vcmp.gt.f32.partialorder %v1078, 0.0
        %v1081 = vmul.f32 %v1077, 0.01
        %v1082 = vmul.f32 %v1078, 0.01
        %v1083 = vsel %vm1079, %v1077, %v1081
        %v1084 = vsel %vm1080, %v1078, %v1082
        %1085 = vrot.lane.b32.xlu0 %v1083, 17
        %v1086 = vpop.permute.xlu0 %1085
        %1087 = vrot.lane.b32.xlu0 %v1084, 17
        %v1088 = vpop.permute.xlu0 %1087
        %v1089 = vsel %vm260, %v1086, %v1088
        %v1090 = vsel %vm260, %v1088, %v1086
        %v1091 = vsel %vm265, %v1090, 0.0
        %v1092 = vsel %vm266, %v1089, 0.0
        %v1093 = vld [vmem:[%s3] sm:$0xff]
        %1094 = vrot.lane.b32.xlu0 %v1083, 16
        %v1095 = vpop.permute.xlu0 %1094
        %1096 = vrot.lane.b32.xlu0 %v1084, 16
        %v1097 = vpop.permute.xlu0 %1096
        %v1098 = vsel %vm274, %v1095, %v1097
        %v1099 = vsel %vm274, %v1097, %v1095
        %v1100 = vsel %vm280, %v1099, 0.0
        %v1101 = vsel %vm281, %v1098, 0.0
        %s1102 = scalar_lea.vmem %s3, 8
        %v1103 = vld [vmem:[%s1102] sm:$0xff]
        %v1105 = vsel %vm286, %v1103, 0
        %1107 = vmatprep.subr.mxu0 %v1101
        %1108 = vmatpush1.msra.mxu0 %v1100
        %1109 = vmatprep.subr.mxu0 0.0
        %1110 = vmatpush1.msra.mxu0 0.0
        %1111 = vmatprep.subr.mxu0 0.0
        %1112 = vmatpush1.msra.mxu0 0.0
        %1113 = vmatprep.subr.mxu0 0.0
        %1114 = vmatpush1.msra.mxu0 0.0
        %1115 = vmatprep.subr.mxu0 0.0
        %1116 = vmatpush1.msra.mxu0 0.0
        %1117 = vmatprep.subr.mxu0 0.0
        %1118 = vmatpush1.msra.mxu0 0.0
        %1119 = vmatprep.subr.mxu0 0.0
        %1120 = vmatpush1.msra.mxu0 0.0
        %1121 = vmatprep.subr.mxu0 0.0
        %1122 = vmatpush1.msra.mxu0 0.0
        %1123 = vmatprep.subr.mxu0 0.0
        %1124 = vmatpush1.msra.mxu0 0.0
        %1125 = vmatprep.subr.mxu0 0.0
        %1126 = vmatpush1.msra.mxu0 0.0
        %1127 = vmatprep.subr.mxu0 0.0
        %1128 = vmatpush1.msra.mxu0 0.0
        %1129 = vmatprep.subr.mxu0 0.0
        %1130 = vmatpush1.msra.mxu0 0.0
        %1131 = vmatprep.subr.mxu0 0.0
        %1132 = vmatpush1.msra.mxu0 0.0
        %1133 = vmatprep.subr.mxu0 0.0
        %1134 = vmatpush1.msra.mxu0 0.0
        %1135 = vmatprep.subr.mxu0 0.0
        %1136 = vmatpush1.msra.mxu0 0.0
        %1137 = vmatprep.subr.mxu0 0.0
        %1138 = vmatpush1.msra.mxu0 0.0
        %1139 = vmatprep.subr.mxu0 0.0
        %1140 = vmatpush1.msra.mxu0 0.0
        %1141 = vmatprep.subr.mxu0 0.0
        %1142 = vmatpush1.msra.mxu0 0.0
        %1143 = vmatprep.subr.mxu0 0.0
        %1144 = vmatpush1.msra.mxu0 0.0
        %1145 = vmatprep.subr.mxu0 0.0
        %1146 = vmatpush1.msra.mxu0 0.0
        %1147 = vmatprep.subr.mxu0 0.0
        %1148 = vmatpush1.msra.mxu0 0.0
        %1149 = vmatprep.subr.mxu0 0.0
        %1150 = vmatpush1.msra.mxu0 0.0
        %1151 = vmatprep.subr.mxu0 0.0
        %1152 = vmatpush1.msra.mxu0 0.0
        %1153 = vmatprep.subr.mxu0 0.0
        %1154 = vmatpush1.msra.mxu0 0.0
        %1155 = vmatprep.subr.mxu0 0.0
        %1156 = vmatpush1.msra.mxu0 0.0
        %1157 = vmatprep.subr.mxu0 0.0
        %1158 = vmatpush1.msra.mxu0 0.0
        %1159 = vmatprep.subr.mxu0 0.0
        %1160 = vmatpush1.msra.mxu0 0.0
        %1161 = vmatprep.subr.mxu0 0.0
        %1162 = vmatpush1.msra.mxu0 0.0
        %1163 = vmatprep.subr.mxu0 0.0
        %1164 = vmatpush1.msra.mxu0 0.0
        %1165 = vmatprep.subr.mxu0 0.0
        %1166 = vmatpush1.msra.mxu0 0.0
        %1167 = vmatprep.subr.mxu0 0.0
        %1168 = vmatpush1.msra.mxu0 0.0
        %1169 = vmatprep.subr.mxu0 0.0
        %1170 = vmatpush1.msra.mxu0 0.0
        %1171 = vmatprep.mubr.f32.mxu0 0.0
        %1172 = vmatmul.mubr.f32.gmra.mrb[0].mxu0 %v1105
        %v1173 = vpop.f32.mrb[0].mxu0
        %v1174 = vadd.f32 0.0, %v1173
        %v1175 = vpop.f32.mrb[0].mxu0
        %v1176 = vadd.f32 0.0, %v1175
        %1177 = vdwg.mxu0
        %v1179 = vsel %vm286, %v1093, 0
        %1181 = vmatprep.subr.mxu0 %v1092
        %1182 = vmatpush1.msra.mxu0 %v1091
        %1183 = vmatprep.subr.mxu0 0.0
        %1184 = vmatpush1.msra.mxu0 0.0
        %1185 = vmatprep.subr.mxu0 0.0
        %1186 = vmatpush1.msra.mxu0 0.0
        %1187 = vmatprep.subr.mxu0 0.0
        %1188 = vmatpush1.msra.mxu0 0.0
        %1189 = vmatprep.subr.mxu0 0.0
        %1190 = vmatpush1.msra.mxu0 0.0
        %1191 = vmatprep.subr.mxu0 0.0
        %1192 = vmatpush1.msra.mxu0 0.0
        %1193 = vmatprep.subr.mxu0 0.0
        %1194 = vmatpush1.msra.mxu0 0.0
        %1195 = vmatprep.subr.mxu0 0.0
        %1196 = vmatpush1.msra.mxu0 0.0
        %1197 = vmatprep.subr.mxu0 0.0
        %1198 = vmatpush1.msra.mxu0 0.0
        %1199 = vmatprep.subr.mxu0 0.0
        %1200 = vmatpush1.msra.mxu0 0.0
        %1201 = vmatprep.subr.mxu0 0.0
        %1202 = vmatpush1.msra.mxu0 0.0
        %1203 = vmatprep.subr.mxu0 0.0
        %1204 = vmatpush1.msra.mxu0 0.0
        %1205 = vmatprep.subr.mxu0 0.0
        %1206 = vmatpush1.msra.mxu0 0.0
        %1207 = vmatprep.subr.mxu0 0.0
        %1208 = vmatpush1.msra.mxu0 0.0
        %1209 = vmatprep.subr.mxu0 0.0
        %1210 = vmatpush1.msra.mxu0 0.0
        %1211 = vmatprep.subr.mxu0 0.0
        %1212 = vmatpush1.msra.mxu0 0.0
        %1213 = vmatprep.subr.mxu0 0.0
        %1214 = vmatpush1.msra.mxu0 0.0
        %1215 = vmatprep.subr.mxu0 0.0
        %1216 = vmatpush1.msra.mxu0 0.0
        %1217 = vmatprep.subr.mxu0 0.0
        %1218 = vmatpush1.msra.mxu0 0.0
        %1219 = vmatprep.subr.mxu0 0.0
        %1220 = vmatpush1.msra.mxu0 0.0
        %1221 = vmatprep.subr.mxu0 0.0
        %1222 = vmatpush1.msra.mxu0 0.0
        %1223 = vmatprep.subr.mxu0 0.0
        %1224 = vmatpush1.msra.mxu0 0.0
        %1225 = vmatprep.subr.mxu0 0.0
        %1226 = vmatpush1.msra.mxu0 0.0
        %1227 = vmatprep.subr.mxu0 0.0
        %1228 = vmatpush1.msra.mxu0 0.0
        %1229 = vmatprep.subr.mxu0 0.0
        %1230 = vmatpush1.msra.mxu0 0.0
        %1231 = vmatprep.subr.mxu0 0.0
        %1232 = vmatpush1.msra.mxu0 0.0
        %1233 = vmatprep.subr.mxu0 0.0
        %1234 = vmatpush1.msra.mxu0 0.0
        %1235 = vmatprep.subr.mxu0 0.0
        %1236 = vmatpush1.msra.mxu0 0.0
        %1237 = vmatprep.subr.mxu0 0.0
        %1238 = vmatpush1.msra.mxu0 0.0
        %1239 = vmatprep.subr.mxu0 0.0
        %1240 = vmatpush1.msra.mxu0 0.0
        %1241 = vmatprep.subr.mxu0 0.0
        %1242 = vmatpush1.msra.mxu0 0.0
        %1243 = vmatprep.subr.mxu0 0.0
        %1244 = vmatpush1.msra.mxu0 0.0
        %1245 = vmatprep.mubr.f32.mxu0 0.0
        %1246 = vmatmul.mubr.f32.gmra.mrb[0].mxu0 %v1179
        %v1247 = vpop.f32.mrb[0].mxu0
        %v1248 = vadd.f32 %v1174, %v1247
        %v1249 = vpop.f32.mrb[0].mxu0
        %v1250 = vadd.f32 %v1176, %v1249
        %1251 = vdwg.mxu0
        %1252 = vrot.lane.b32.xlu0 %v1083, 15
        %v1253 = vpop.permute.xlu0 %1252
        %1254 = vrot.lane.b32.xlu0 %v1084, 15
        %v1255 = vpop.permute.xlu0 %1254
        %v1256 = vsel %vm439, %v1253, %v1255
        %v1257 = vsel %vm439, %v1255, %v1253
        %v1258 = vsel %vm445, %v1257, 0.0
        %v1259 = vsel %vm446, %v1256, 0.0
        %s1260 = scalar_lea.vmem %s3, 16
        %v1261 = vld [vmem:[%s1260] sm:$0xff]
        %v1263 = vsel %vm286, %v1261, 0
        %1265 = vmatprep.subr.mxu0 %v1259
        %1266 = vmatpush1.msra.mxu0 %v1258
        %1267 = vmatprep.subr.mxu0 0.0
        %1268 = vmatpush1.msra.mxu0 0.0
        %1269 = vmatprep.subr.mxu0 0.0
        %1270 = vmatpush1.msra.mxu0 0.0
        %1271 = vmatprep.subr.mxu0 0.0
        %1272 = vmatpush1.msra.mxu0 0.0
        %1273 = vmatprep.subr.mxu0 0.0
        %1274 = vmatpush1.msra.mxu0 0.0
        %1275 = vmatprep.subr.mxu0 0.0
        %1276 = vmatpush1.msra.mxu0 0.0
        %1277 = vmatprep.subr.mxu0 0.0
        %1278 = vmatpush1.msra.mxu0 0.0
        %1279 = vmatprep.subr.mxu0 0.0
        %1280 = vmatpush1.msra.mxu0 0.0
        %1281 = vmatprep.subr.mxu0 0.0
        %1282 = vmatpush1.msra.mxu0 0.0
        %1283 = vmatprep.subr.mxu0 0.0
        %1284 = vmatpush1.msra.mxu0 0.0
        %1285 = vmatprep.subr.mxu0 0.0
        %1286 = vmatpush1.msra.mxu0 0.0
        %1287 = vmatprep.subr.mxu0 0.0
        %1288 = vmatpush1.msra.mxu0 0.0
        %1289 = vmatprep.subr.mxu0 0.0
        %1290 = vmatpush1.msra.mxu0 0.0
        %1291 = vmatprep.subr.mxu0 0.0
        %1292 = vmatpush1.msra.mxu0 0.0
        %1293 = vmatprep.subr.mxu0 0.0
        %1294 = vmatpush1.msra.mxu0 0.0
        %1295 = vmatprep.subr.mxu0 0.0
        %1296 = vmatpush1.msra.mxu0 0.0
        %1297 = vmatprep.subr.mxu0 0.0
        %1298 = vmatpush1.msra.mxu0 0.0
        %1299 = vmatprep.subr.mxu0 0.0
        %1300 = vmatpush1.msra.mxu0 0.0
        %1301 = vmatprep.subr.mxu0 0.0
        %1302 = vmatpush1.msra.mxu0 0.0
        %1303 = vmatprep.subr.mxu0 0.0
        %1304 = vmatpush1.msra.mxu0 0.0
        %1305 = vmatprep.subr.mxu0 0.0
        %1306 = vmatpush1.msra.mxu0 0.0
        %1307 = vmatprep.subr.mxu0 0.0
        %1308 = vmatpush1.msra.mxu0 0.0
        %1309 = vmatprep.subr.mxu0 0.0
        %1310 = vmatpush1.msra.mxu0 0.0
        %1311 = vmatprep.subr.mxu0 0.0
        %1312 = vmatpush1.msra.mxu0 0.0
        %1313 = vmatprep.subr.mxu0 0.0
        %1314 = vmatpush1.msra.mxu0 0.0
        %1315 = vmatprep.subr.mxu0 0.0
        %1316 = vmatpush1.msra.mxu0 0.0
        %1317 = vmatprep.subr.mxu0 0.0
        %1318 = vmatpush1.msra.mxu0 0.0
        %1319 = vmatprep.subr.mxu0 0.0
        %1320 = vmatpush1.msra.mxu0 0.0
        %1321 = vmatprep.subr.mxu0 0.0
        %1322 = vmatpush1.msra.mxu0 0.0
        %1323 = vmatprep.subr.mxu0 0.0
        %1324 = vmatpush1.msra.mxu0 0.0
        %1325 = vmatprep.subr.mxu0 0.0
        %1326 = vmatpush1.msra.mxu0 0.0
        %1327 = vmatprep.subr.mxu0 0.0
        %1328 = vmatpush1.msra.mxu0 0.0
        %1329 = vmatprep.mubr.f32.mxu0 0.0
        %1330 = vmatmul.mubr.f32.gmra.mrb[0].mxu0 %v1263
        %v1331 = vpop.f32.mrb[0].mxu0
        %v1332 = vadd.f32 0.0, %v1331
        %v1333 = vpop.f32.mrb[0].mxu0
        %v1334 = vadd.f32 0.0, %v1333
        %1335 = vdwg.mxu0
        %v1336 = vadd.f32 %v1248, %v1332
        %v1337 = vadd.f32 %v1250, %v1334
        %1338 = vrot.lane.b32.xlu0 %v1083, 1
        %v1339 = vpop.permute.xlu0 %1338
        %1340 = vrot.lane.b32.xlu0 %v1084, 1
        %v1341 = vpop.permute.xlu0 %1340
        %v1342 = vsel %vm531, %v1339, %v1341
        %v1343 = vsel %vm531, %v1341, %v1339
        %v1344 = vsel %vm537, %v1343, 0.0
        %v1345 = vsel %vm538, %v1342, 0.0
        %s1346 = scalar_lea.vmem %s3, 24
        %v1347 = vld [vmem:[%s1346] sm:$0xff]
        %v1349 = vsel %vm286, %v1347, 0
        %1351 = vmatprep.subr.mxu0 %v1345
        %1352 = vmatpush1.msra.mxu0 %v1344
        %1353 = vmatprep.subr.mxu0 0.0
        %1354 = vmatpush1.msra.mxu0 0.0
        %1355 = vmatprep.subr.mxu0 0.0
        %1356 = vmatpush1.msra.mxu0 0.0
        %1357 = vmatprep.subr.mxu0 0.0
        %1358 = vmatpush1.msra.mxu0 0.0
        %1359 = vmatprep.subr.mxu0 0.0
        %1360 = vmatpush1.msra.mxu0 0.0
        %1361 = vmatprep.subr.mxu0 0.0
        %1362 = vmatpush1.msra.mxu0 0.0
        %1363 = vmatprep.subr.mxu0 0.0
        %1364 = vmatpush1.msra.mxu0 0.0
        %1365 = vmatprep.subr.mxu0 0.0
        %1366 = vmatpush1.msra.mxu0 0.0
        %1367 = vmatprep.subr.mxu0 0.0
        %1368 = vmatpush1.msra.mxu0 0.0
        %1369 = vmatprep.subr.mxu0 0.0
        %1370 = vmatpush1.msra.mxu0 0.0
        %1371 = vmatprep.subr.mxu0 0.0
        %1372 = vmatpush1.msra.mxu0 0.0
        %1373 = vmatprep.subr.mxu0 0.0
        %1374 = vmatpush1.msra.mxu0 0.0
        %1375 = vmatprep.subr.mxu0 0.0
        %1376 = vmatpush1.msra.mxu0 0.0
        %1377 = vmatprep.subr.mxu0 0.0
        %1378 = vmatpush1.msra.mxu0 0.0
        %1379 = vmatprep.subr.mxu0 0.0
        %1380 = vmatpush1.msra.mxu0 0.0
        %1381 = vmatprep.subr.mxu0 0.0
        %1382 = vmatpush1.msra.mxu0 0.0
        %1383 = vmatprep.subr.mxu0 0.0
        %1384 = vmatpush1.msra.mxu0 0.0
        %1385 = vmatprep.subr.mxu0 0.0
        %1386 = vmatpush1.msra.mxu0 0.0
        %1387 = vmatprep.subr.mxu0 0.0
        %1388 = vmatpush1.msra.mxu0 0.0
        %1389 = vmatprep.subr.mxu0 0.0
        %1390 = vmatpush1.msra.mxu0 0.0
        %1391 = vmatprep.subr.mxu0 0.0
        %1392 = vmatpush1.msra.mxu0 0.0
        %1393 = vmatprep.subr.mxu0 0.0
        %1394 = vmatpush1.msra.mxu0 0.0
        %1395 = vmatprep.subr.mxu0 0.0
        %1396 = vmatpush1.msra.mxu0 0.0
        %1397 = vmatprep.subr.mxu0 0.0
        %1398 = vmatpush1.msra.mxu0 0.0
        %1399 = vmatprep.subr.mxu0 0.0
        %1400 = vmatpush1.msra.mxu0 0.0
        %1401 = vmatprep.subr.mxu0 0.0
        %1402 = vmatpush1.msra.mxu0 0.0
        %1403 = vmatprep.subr.mxu0 0.0
        %1404 = vmatpush1.msra.mxu0 0.0
        %1405 = vmatprep.subr.mxu0 0.0
        %1406 = vmatpush1.msra.mxu0 0.0
        %1407 = vmatprep.subr.mxu0 0.0
        %1408 = vmatpush1.msra.mxu0 0.0
        %1409 = vmatprep.subr.mxu0 0.0
        %1410 = vmatpush1.msra.mxu0 0.0
        %1411 = vmatprep.subr.mxu0 0.0
        %1412 = vmatpush1.msra.mxu0 0.0
        %1413 = vmatprep.subr.mxu0 0.0
        %1414 = vmatpush1.msra.mxu0 0.0
        %1415 = vmatprep.mubr.f32.mxu0 0.0
        %1416 = vmatmul.mubr.f32.gmra.mrb[0].mxu0 %v1349
        %v1417 = vpop.f32.mrb[0].mxu0
        %v1418 = vadd.f32 0.0, %v1417
        %v1419 = vpop.f32.mrb[0].mxu0
        %v1420 = vadd.f32 0.0, %v1419
        %1421 = vdwg.mxu0
        %v1422 = vadd.f32 %v1336, %v1418
        %v1423 = vadd.f32 %v1337, %v1420
        %v1424 = vsel %vm622, %v1083, 0.0
        %v1425 = vsel %vm623, %v1084, 0.0
        %s1426 = scalar_lea.vmem %s3, 32
        %v1427 = vld [vmem:[%s1426] sm:$0xff]
        %v1429 = vsel %vm286, %v1427, 0
        %1431 = vmatprep.subr.mxu0 %v1425
        %1432 = vmatpush1.msra.mxu0 %v1424
        %1433 = vmatprep.subr.mxu0 0.0
        %1434 = vmatpush1.msra.mxu0 0.0
        %1435 = vmatprep.subr.mxu0 0.0
        %1436 = vmatpush1.msra.mxu0 0.0
        %1437 = vmatprep.subr.mxu0 0.0
        %1438 = vmatpush1.msra.mxu0 0.0
        %1439 = vmatprep.subr.mxu0 0.0
        %1440 = vmatpush1.msra.mxu0 0.0
        %1441 = vmatprep.subr.mxu0 0.0
        %1442 = vmatpush1.msra.mxu0 0.0
        %1443 = vmatprep.subr.mxu0 0.0
        %1444 = vmatpush1.msra.mxu0 0.0
        %1445 = vmatprep.subr.mxu0 0.0
        %1446 = vmatpush1.msra.mxu0 0.0
        %1447 = vmatprep.subr.mxu0 0.0
        %1448 = vmatpush1.msra.mxu0 0.0
        %1449 = vmatprep.subr.mxu0 0.0
        %1450 = vmatpush1.msra.mxu0 0.0
        %1451 = vmatprep.subr.mxu0 0.0
        %1452 = vmatpush1.msra.mxu0 0.0
        %1453 = vmatprep.subr.mxu0 0.0
        %1454 = vmatpush1.msra.mxu0 0.0
        %1455 = vmatprep.subr.mxu0 0.0
        %1456 = vmatpush1.msra.mxu0 0.0
        %1457 = vmatprep.subr.mxu0 0.0
        %1458 = vmatpush1.msra.mxu0 0.0
        %1459 = vmatprep.subr.mxu0 0.0
        %1460 = vmatpush1.msra.mxu0 0.0
        %1461 = vmatprep.subr.mxu0 0.0
        %1462 = vmatpush1.msra.mxu0 0.0
        %1463 = vmatprep.subr.mxu0 0.0
        %1464 = vmatpush1.msra.mxu0 0.0
        %1465 = vmatprep.subr.mxu0 0.0
        %1466 = vmatpush1.msra.mxu0 0.0
        %1467 = vmatprep.subr.mxu0 0.0
        %1468 = vmatpush1.msra.mxu0 0.0
        %1469 = vmatprep.subr.mxu0 0.0
        %1470 = vmatpush1.msra.mxu0 0.0
        %1471 = vmatprep.subr.mxu0 0.0
        %1472 = vmatpush1.msra.mxu0 0.0
        %1473 = vmatprep.subr.mxu0 0.0
        %1474 = vmatpush1.msra.mxu0 0.0
        %1475 = vmatprep.subr.mxu0 0.0
        %1476 = vmatpush1.msra.mxu0 0.0
        %1477 = vmatprep.subr.mxu0 0.0
        %1478 = vmatpush1.msra.mxu0 0.0
        %1479 = vmatprep.subr.mxu0 0.0
        %1480 = vmatpush1.msra.mxu0 0.0
        %1481 = vmatprep.subr.mxu0 0.0
        %1482 = vmatpush1.msra.mxu0 0.0
        %1483 = vmatprep.subr.mxu0 0.0
        %1484 = vmatpush1.msra.mxu0 0.0
        %1485 = vmatprep.subr.mxu0 0.0
        %1486 = vmatpush1.msra.mxu0 0.0
        %1487 = vmatprep.subr.mxu0 0.0
        %1488 = vmatpush1.msra.mxu0 0.0
        %1489 = vmatprep.subr.mxu0 0.0
        %1490 = vmatpush1.msra.mxu0 0.0
        %1491 = vmatprep.subr.mxu0 0.0
        %1492 = vmatpush1.msra.mxu0 0.0
        %1493 = vmatprep.subr.mxu0 0.0
        %1494 = vmatpush1.msra.mxu0 0.0
        %1495 = vmatprep.mubr.f32.mxu0 0.0
        %1496 = vmatmul.mubr.f32.gmra.mrb[0].mxu0 %v1429
        %v1497 = vpop.f32.mrb[0].mxu0
        %v1498 = vadd.f32 0.0, %v1497
        %v1499 = vpop.f32.mrb[0].mxu0
        %v1500 = vadd.f32 0.0, %v1499
        %1501 = vdwg.mxu0
        %v1502 = vadd.f32 %v1422, %v1498
        %v1503 = vadd.f32 %v1423, %v1500
        %1504 = vrot.lane.b32.xlu0 %v1083, 127
        %v1505 = vpop.permute.xlu0 %1504
        %1506 = vrot.lane.b32.xlu0 %v1084, 127
        %v1507 = vpop.permute.xlu0 %1506
        %v1508 = vsel %vm708, %v1505, %v1507
        %v1509 = vsel %vm708, %v1507, %v1505
        %v1510 = vsel %vm714, %v1508, 0.0
        %v1511 = vsel %vm715, %v1509, 0.0
        %s1512 = scalar_lea.vmem %s3, 40
        %v1513 = vld [vmem:[%s1512] sm:$0xff]
        %v1515 = vsel %vm286, %v1513, 0
        %1517 = vmatprep.subr.mxu0 %v1511
        %1518 = vmatpush1.msra.mxu0 %v1510
        %1519 = vmatprep.subr.mxu0 0.0
        %1520 = vmatpush1.msra.mxu0 0.0
        %1521 = vmatprep.subr.mxu0 0.0
        %1522 = vmatpush1.msra.mxu0 0.0
        %1523 = vmatprep.subr.mxu0 0.0
        %1524 = vmatpush1.msra.mxu0 0.0
        %1525 = vmatprep.subr.mxu0 0.0
        %1526 = vmatpush1.msra.mxu0 0.0
        %1527 = vmatprep.subr.mxu0 0.0
        %1528 = vmatpush1.msra.mxu0 0.0
        %1529 = vmatprep.subr.mxu0 0.0
        %1530 = vmatpush1.msra.mxu0 0.0
        %1531 = vmatprep.subr.mxu0 0.0
        %1532 = vmatpush1.msra.mxu0 0.0
        %1533 = vmatprep.subr.mxu0 0.0
        %1534 = vmatpush1.msra.mxu0 0.0
        %1535 = vmatprep.subr.mxu0 0.0
        %1536 = vmatpush1.msra.mxu0 0.0
        %1537 = vmatprep.subr.mxu0 0.0
        %1538 = vmatpush1.msra.mxu0 0.0
        %1539 = vmatprep.subr.mxu0 0.0
        %1540 = vmatpush1.msra.mxu0 0.0
        %1541 = vmatprep.subr.mxu0 0.0
        %1542 = vmatpush1.msra.mxu0 0.0
        %1543 = vmatprep.subr.mxu0 0.0
        %1544 = vmatpush1.msra.mxu0 0.0
        %1545 = vmatprep.subr.mxu0 0.0
        %1546 = vmatpush1.msra.mxu0 0.0
        %1547 = vmatprep.subr.mxu0 0.0
        %1548 = vmatpush1.msra.mxu0 0.0
        %1549 = vmatprep.subr.mxu0 0.0
        %1550 = vmatpush1.msra.mxu0 0.0
        %1551 = vmatprep.subr.mxu0 0.0
        %1552 = vmatpush1.msra.mxu0 0.0
        %1553 = vmatprep.subr.mxu0 0.0
        %1554 = vmatpush1.msra.mxu0 0.0
        %1555 = vmatprep.subr.mxu0 0.0
        %1556 = vmatpush1.msra.mxu0 0.0
        %1557 = vmatprep.subr.mxu0 0.0
        %1558 = vmatpush1.msra.mxu0 0.0
        %1559 = vmatprep.subr.mxu0 0.0
        %1560 = vmatpush1.msra.mxu0 0.0
        %1561 = vmatprep.subr.mxu0 0.0
        %1562 = vmatpush1.msra.mxu0 0.0
        %1563 = vmatprep.subr.mxu0 0.0
        %1564 = vmatpush1.msra.mxu0 0.0
        %1565 = vmatprep.subr.mxu0 0.0
        %1566 = vmatpush1.msra.mxu0 0.0
        %1567 = vmatprep.subr.mxu0 0.0
        %1568 = vmatpush1.msra.mxu0 0.0
        %1569 = vmatprep.subr.mxu0 0.0
        %1570 = vmatpush1.msra.mxu0 0.0
        %1571 = vmatprep.subr.mxu0 0.0
        %1572 = vmatpush1.msra.mxu0 0.0
        %1573 = vmatprep.subr.mxu0 0.0
        %1574 = vmatpush1.msra.mxu0 0.0
        %1575 = vmatprep.subr.mxu0 0.0
        %1576 = vmatpush1.msra.mxu0 0.0
        %1577 = vmatprep.subr.mxu0 0.0
        %1578 = vmatpush1.msra.mxu0 0.0
        %1579 = vmatprep.subr.mxu0 0.0
        %1580 = vmatpush1.msra.mxu0 0.0
        %1581 = vmatprep.mubr.f32.mxu0 0.0
        %1582 = vmatmul.mubr.f32.gmra.mrb[0].mxu0 %v1515
        %v1583 = vpop.f32.mrb[0].mxu0
        %v1584 = vadd.f32 0.0, %v1583
        %v1585 = vpop.f32.mrb[0].mxu0
        %v1586 = vadd.f32 0.0, %v1585
        %1587 = vdwg.mxu0
        %v1588 = vadd.f32 %v1502, %v1584
        %v1589 = vadd.f32 %v1503, %v1586
        %1590 = vrot.lane.b32.xlu0 %v1083, 113
        %v1591 = vpop.permute.xlu0 %1590
        %1592 = vrot.lane.b32.xlu0 %v1084, 113
        %v1593 = vpop.permute.xlu0 %1592
        %v1594 = vsel %vm800, %v1591, %v1593
        %v1595 = vsel %vm800, %v1593, %v1591
        %v1596 = vsel %vm806, %v1594, 0.0
        %v1597 = vsel %vm807, %v1595, 0.0
        %s1598 = scalar_lea.vmem %s3, 48
        %v1599 = vld [vmem:[%s1598] sm:$0xff]
        %v1601 = vsel %vm286, %v1599, 0
        %1603 = vmatprep.subr.mxu0 %v1597
        %1604 = vmatpush1.msra.mxu0 %v1596
        %1605 = vmatprep.subr.mxu0 0.0
        %1606 = vmatpush1.msra.mxu0 0.0
        %1607 = vmatprep.subr.mxu0 0.0
        %1608 = vmatpush1.msra.mxu0 0.0
        %1609 = vmatprep.subr.mxu0 0.0
        %1610 = vmatpush1.msra.mxu0 0.0
        %1611 = vmatprep.subr.mxu0 0.0
        %1612 = vmatpush1.msra.mxu0 0.0
        %1613 = vmatprep.subr.mxu0 0.0
        %1614 = vmatpush1.msra.mxu0 0.0
        %1615 = vmatprep.subr.mxu0 0.0
        %1616 = vmatpush1.msra.mxu0 0.0
        %1617 = vmatprep.subr.mxu0 0.0
        %1618 = vmatpush1.msra.mxu0 0.0
        %1619 = vmatprep.subr.mxu0 0.0
        %1620 = vmatpush1.msra.mxu0 0.0
        %1621 = vmatprep.subr.mxu0 0.0
        %1622 = vmatpush1.msra.mxu0 0.0
        %1623 = vmatprep.subr.mxu0 0.0
        %1624 = vmatpush1.msra.mxu0 0.0
        %1625 = vmatprep.subr.mxu0 0.0
        %1626 = vmatpush1.msra.mxu0 0.0
        %1627 = vmatprep.subr.mxu0 0.0
        %1628 = vmatpush1.msra.mxu0 0.0
        %1629 = vmatprep.subr.mxu0 0.0
        %1630 = vmatpush1.msra.mxu0 0.0
        %1631 = vmatprep.subr.mxu0 0.0
        %1632 = vmatpush1.msra.mxu0 0.0
        %1633 = vmatprep.subr.mxu0 0.0
        %1634 = vmatpush1.msra.mxu0 0.0
        %1635 = vmatprep.subr.mxu0 0.0
        %1636 = vmatpush1.msra.mxu0 0.0
        %1637 = vmatprep.subr.mxu0 0.0
        %1638 = vmatpush1.msra.mxu0 0.0
        %1639 = vmatprep.subr.mxu0 0.0
        %1640 = vmatpush1.msra.mxu0 0.0
        %1641 = vmatprep.subr.mxu0 0.0
        %1642 = vmatpush1.msra.mxu0 0.0
        %1643 = vmatprep.subr.mxu0 0.0
        %1644 = vmatpush1.msra.mxu0 0.0
        %1645 = vmatprep.subr.mxu0 0.0
        %1646 = vmatpush1.msra.mxu0 0.0
        %1647 = vmatprep.subr.mxu0 0.0
        %1648 = vmatpush1.msra.mxu0 0.0
        %1649 = vmatprep.subr.mxu0 0.0
        %1650 = vmatpush1.msra.mxu0 0.0
        %1651 = vmatprep.subr.mxu0 0.0
        %1652 = vmatpush1.msra.mxu0 0.0
        %1653 = vmatprep.subr.mxu0 0.0
        %1654 = vmatpush1.msra.mxu0 0.0
        %1655 = vmatprep.subr.mxu0 0.0
        %1656 = vmatpush1.msra.mxu0 0.0
        %1657 = vmatprep.subr.mxu0 0.0
        %1658 = vmatpush1.msra.mxu0 0.0
        %1659 = vmatprep.subr.mxu0 0.0
        %1660 = vmatpush1.msra.mxu0 0.0
        %1661 = vmatprep.subr.mxu0 0.0
        %1662 = vmatpush1.msra.mxu0 0.0
        %1663 = vmatprep.subr.mxu0 0.0
        %1664 = vmatpush1.msra.mxu0 0.0
        %1665 = vmatprep.subr.mxu0 0.0
        %1666 = vmatpush1.msra.mxu0 0.0
        %1667 = vmatprep.mubr.f32.mxu0 0.0
        %1668 = vmatmul.mubr.f32.gmra.mrb[0].mxu0 %v1601
        %v1669 = vpop.f32.mrb[0].mxu0
        %v1670 = vadd.f32 0.0, %v1669
        %v1671 = vpop.f32.mrb[0].mxu0
        %v1672 = vadd.f32 0.0, %v1671
        %1673 = vdwg.mxu0
        %v1674 = vadd.f32 %v1588, %v1670
        %v1675 = vadd.f32 %v1589, %v1672
        %1676 = vrot.lane.b32.xlu0 %v1083, 112
        %v1677 = vpop.permute.xlu0 %1676
        %1678 = vrot.lane.b32.xlu0 %v1084, 112
        %v1679 = vpop.permute.xlu0 %1678
        %v1680 = vsel %vm892, %v1677, %v1679
        %v1681 = vsel %vm892, %v1679, %v1677
        %v1682 = vsel %vm898, %v1680, 0.0
        %v1683 = vsel %vm899, %v1681, 0.0
        %s1684 = scalar_lea.vmem %s3, 56
        %v1685 = vld [vmem:[%s1684] sm:$0xff]
        %v1687 = vsel %vm286, %v1685, 0
        %1689 = vmatprep.subr.mxu0 %v1683
        %1690 = vmatpush1.msra.mxu0 %v1682
        %1691 = vmatprep.subr.mxu0 0.0
        %1692 = vmatpush1.msra.mxu0 0.0
        %1693 = vmatprep.subr.mxu0 0.0
        %1694 = vmatpush1.msra.mxu0 0.0
        %1695 = vmatprep.subr.mxu0 0.0
        %1696 = vmatpush1.msra.mxu0 0.0
        %1697 = vmatprep.subr.mxu0 0.0
        %1698 = vmatpush1.msra.mxu0 0.0
        %1699 = vmatprep.subr.mxu0 0.0
        %1700 = vmatpush1.msra.mxu0 0.0
        %1701 = vmatprep.subr.mxu0 0.0
        %1702 = vmatpush1.msra.mxu0 0.0
        %1703 = vmatprep.subr.mxu0 0.0
        %1704 = vmatpush1.msra.mxu0 0.0
        %1705 = vmatprep.subr.mxu0 0.0
        %1706 = vmatpush1.msra.mxu0 0.0
        %1707 = vmatprep.subr.mxu0 0.0
        %1708 = vmatpush1.msra.mxu0 0.0
        %1709 = vmatprep.subr.mxu0 0.0
        %1710 = vmatpush1.msra.mxu0 0.0
        %1711 = vmatprep.subr.mxu0 0.0
        %1712 = vmatpush1.msra.mxu0 0.0
        %1713 = vmatprep.subr.mxu0 0.0
        %1714 = vmatpush1.msra.mxu0 0.0
        %1715 = vmatprep.subr.mxu0 0.0
        %1716 = vmatpush1.msra.mxu0 0.0
        %1717 = vmatprep.subr.mxu0 0.0
        %1718 = vmatpush1.msra.mxu0 0.0
        %1719 = vmatprep.subr.mxu0 0.0
        %1720 = vmatpush1.msra.mxu0 0.0
        %1721 = vmatprep.subr.mxu0 0.0
        %1722 = vmatpush1.msra.mxu0 0.0
        %1723 = vmatprep.subr.mxu0 0.0
        %1724 = vmatpush1.msra.mxu0 0.0
        %1725 = vmatprep.subr.mxu0 0.0
        %1726 = vmatpush1.msra.mxu0 0.0
        %1727 = vmatprep.subr.mxu0 0.0
        %1728 = vmatpush1.msra.mxu0 0.0
        %1729 = vmatprep.subr.mxu0 0.0
        %1730 = vmatpush1.msra.mxu0 0.0
        %1731 = vmatprep.subr.mxu0 0.0
        %1732 = vmatpush1.msra.mxu0 0.0
        %1733 = vmatprep.subr.mxu0 0.0
        %1734 = vmatpush1.msra.mxu0 0.0
        %1735 = vmatprep.subr.mxu0 0.0
        %1736 = vmatpush1.msra.mxu0 0.0
        %1737 = vmatprep.subr.mxu0 0.0
        %1738 = vmatpush1.msra.mxu0 0.0
        %1739 = vmatprep.subr.mxu0 0.0
        %1740 = vmatpush1.msra.mxu0 0.0
        %1741 = vmatprep.subr.mxu0 0.0
        %1742 = vmatpush1.msra.mxu0 0.0
        %1743 = vmatprep.subr.mxu0 0.0
        %1744 = vmatpush1.msra.mxu0 0.0
        %1745 = vmatprep.subr.mxu0 0.0
        %1746 = vmatpush1.msra.mxu0 0.0
        %1747 = vmatprep.subr.mxu0 0.0
        %1748 = vmatpush1.msra.mxu0 0.0
        %1749 = vmatprep.subr.mxu0 0.0
        %1750 = vmatpush1.msra.mxu0 0.0
        %1751 = vmatprep.subr.mxu0 0.0
        %1752 = vmatpush1.msra.mxu0 0.0
        %1753 = vmatprep.mubr.f32.mxu0 0.0
        %1754 = vmatmul.mubr.f32.gmra.mrb[0].mxu0 %v1687
        %v1755 = vpop.f32.mrb[0].mxu0
        %v1756 = vadd.f32 0.0, %v1755
        %v1757 = vpop.f32.mrb[0].mxu0
        %v1758 = vadd.f32 0.0, %v1757
        %1759 = vdwg.mxu0
        %v1760 = vadd.f32 %v1674, %v1756
        %v1761 = vadd.f32 %v1675, %v1758
        %1762 = vrot.lane.b32.xlu0 %v1083, 111
        %v1763 = vpop.permute.xlu0 %1762
        %1764 = vrot.lane.b32.xlu0 %v1084, 111
        %v1765 = vpop.permute.xlu0 %1764
        %v1766 = vsel %vm984, %v1763, %v1765
        %v1767 = vsel %vm984, %v1765, %v1763
        %v1768 = vsel %vm990, %v1766, 0.0
        %v1769 = vsel %vm991, %v1767, 0.0
        %s1770 = scalar_lea.vmem %s3, 64
        %v1771 = vld [vmem:[%s1770] sm:$0xff]
        %v1773 = vsel %vm286, %v1771, 0
        %1775 = vmatprep.subr.mxu0 %v1769
        %1776 = vmatpush1.msra.mxu0 %v1768
        %1777 = vmatprep.subr.mxu0 0.0
        %1778 = vmatpush1.msra.mxu0 0.0
        %1779 = vmatprep.subr.mxu0 0.0
        %1780 = vmatpush1.msra.mxu0 0.0
        %1781 = vmatprep.subr.mxu0 0.0
        %1782 = vmatpush1.msra.mxu0 0.0
        %1783 = vmatprep.subr.mxu0 0.0
        %1784 = vmatpush1.msra.mxu0 0.0
        %1785 = vmatprep.subr.mxu0 0.0
        %1786 = vmatpush1.msra.mxu0 0.0
        %1787 = vmatprep.subr.mxu0 0.0
        %1788 = vmatpush1.msra.mxu0 0.0
        %1789 = vmatprep.subr.mxu0 0.0
        %1790 = vmatpush1.msra.mxu0 0.0
        %1791 = vmatprep.subr.mxu0 0.0
        %1792 = vmatpush1.msra.mxu0 0.0
        %1793 = vmatprep.subr.mxu0 0.0
        %1794 = vmatpush1.msra.mxu0 0.0
        %1795 = vmatprep.subr.mxu0 0.0
        %1796 = vmatpush1.msra.mxu0 0.0
        %1797 = vmatprep.subr.mxu0 0.0
        %1798 = vmatpush1.msra.mxu0 0.0
        %1799 = vmatprep.subr.mxu0 0.0
        %1800 = vmatpush1.msra.mxu0 0.0
        %1801 = vmatprep.subr.mxu0 0.0
        %1802 = vmatpush1.msra.mxu0 0.0
        %1803 = vmatprep.subr.mxu0 0.0
        %1804 = vmatpush1.msra.mxu0 0.0
        %1805 = vmatprep.subr.mxu0 0.0
        %1806 = vmatpush1.msra.mxu0 0.0
        %1807 = vmatprep.subr.mxu0 0.0
        %1808 = vmatpush1.msra.mxu0 0.0
        %1809 = vmatprep.subr.mxu0 0.0
        %1810 = vmatpush1.msra.mxu0 0.0
        %1811 = vmatprep.subr.mxu0 0.0
        %1812 = vmatpush1.msra.mxu0 0.0
        %1813 = vmatprep.subr.mxu0 0.0
        %1814 = vmatpush1.msra.mxu0 0.0
        %1815 = vmatprep.subr.mxu0 0.0
        %1816 = vmatpush1.msra.mxu0 0.0
        %1817 = vmatprep.subr.mxu0 0.0
        %1818 = vmatpush1.msra.mxu0 0.0
        %1819 = vmatprep.subr.mxu0 0.0
        %1820 = vmatpush1.msra.mxu0 0.0
        %1821 = vmatprep.subr.mxu0 0.0
        %1822 = vmatpush1.msra.mxu0 0.0
        %1823 = vmatprep.subr.mxu0 0.0
        %1824 = vmatpush1.msra.mxu0 0.0
        %1825 = vmatprep.subr.mxu0 0.0
        %1826 = vmatpush1.msra.mxu0 0.0
        %1827 = vmatprep.subr.mxu0 0.0
        %1828 = vmatpush1.msra.mxu0 0.0
        %1829 = vmatprep.subr.mxu0 0.0
        %1830 = vmatpush1.msra.mxu0 0.0
        %1831 = vmatprep.subr.mxu0 0.0
        %1832 = vmatpush1.msra.mxu0 0.0
        %1833 = vmatprep.subr.mxu0 0.0
        %1834 = vmatpush1.msra.mxu0 0.0
        %1835 = vmatprep.subr.mxu0 0.0
        %1836 = vmatpush1.msra.mxu0 0.0
        %1837 = vmatprep.subr.mxu0 0.0
        %1838 = vmatpush1.msra.mxu0 0.0
        %1839 = vmatprep.mubr.f32.mxu0 0.0
        %1840 = vmatmul.mubr.f32.gmra.mrb[0].mxu0 %v1773
        %v1841 = vpop.f32.mrb[0].mxu0
        %v1842 = vadd.f32 0.0, %v1841
        %v1843 = vpop.f32.mrb[0].mxu0
        %v1844 = vadd.f32 0.0, %v1843
        %1845 = vdwg.mxu0
        %v1846 = vadd.f32 %v1760, %v1842
        %v1847 = vadd.f32 %v1761, %v1844
        %1849 = vset.pattern.permute.xlu0 0
        %1850 = vperm.xlu0 %1849, %v251
        %v1851 = vpop.permute.xlu0 %1850
        %v1853 = vadd.f32 %v1846, %v1851
        %v1854 = vadd.f32 %v1847, %v1851
        %v1855 = vadd.f32 %v1853, %v252
        %v1856 = vadd.f32 %v1854, %v253
        %vm1857 = vcmp.gt.f32.partialorder %v1855, 0.0
        %vm1858 = vcmp.gt.f32.partialorder %v1856, 0.0
        %v1859 = vmul.f32 %v1855, 0.01
        %v1860 = vmul.f32 %v1856, 0.01
        %v1861 = vsel %vm1857, %v1855, %v1859
        %v1862 = vsel %vm1858, %v1856, %v1860
        %v1865 = vcombine.low %v1861, %v1862
        %1867 = vst [vmem:[%s244] sm:$0xff] %v1865
        %s1868 = sand.u32 %s159, 1
        %s1869 = scalar_lea.sflag [#allocation3], %s1868
        %s1870 = sand.u32 %s159, 1
        %s1871 = smul.addr %s1870, 8
        %s1872 = scalar_lea.vmem [#allocation2], %s1871
        // Predicated region
        $region45: #{tpu_custom_call.1} parent=43 // pred_check
          %p1873 = pneg %p169
        $region46: #{tpu_custom_call.1} parent=43 // pred_check_branch
          %1875 = sbr.rel (%p1873) target = $region48
        $region47: #{tpu_custom_call.1} parent=43 // pred_region
          %s1877 = ssub.s32 128, 128
          %1878 = vsyncadd %s1869, %s1877
          %s1879 = smul.addr %s20, 2
          %s1880 = smul.addr %s1879, 64
          %s1881 = scalar_lea.hbm %s6, %s1880
          %s1883 = sshll.u32 %s1872, 4
          %s1884 = int_to_ptr.vmem [resolvable:$true] %s1883
          %1886 = dma.vmem_to_hbm [thread:$0]  %s1884, 128, %s1881, %s1869
        $region48: #{tpu_custom_call.1} parent=43 // pred_fallthru
          _
      $region44: #{tpu_custom_call.1} parent=5 // pred_fallthru
        _
      %p1887 = scmp.le.s32.totalorder 2, %s15
      // Predicated region
      $region49: #{tpu_custom_call.1} parent=5 // pred_check
        %p1888 = pneg %p1887
      $region50: #{tpu_custom_call.1} parent=5 // pred_check_branch
        %1890 = sbr.rel (%p1888) target = $region52
      $region51: #{tpu_custom_call.1} parent=5 // pred_region
        %s1891 = ssub.s32 %s15, 2
        // Predicated region
        $region53: #{tpu_custom_call.1} parent=51 // pred_check
          %p1892 = pneg %p175
        $region54: #{tpu_custom_call.1} parent=51 // pred_check_branch
          %1894 = sbr.rel (%p1892) target = $region56
        $region55: #{tpu_custom_call.1} parent=51 // pred_region
          %s1895 = sand.u32 %s160, 1
          %s1896 = scalar_lea.sflag [#allocation3], %s1895
          %s1897 = sand.u32 %s160, 1
          %s1898 = smul.addr %s1897, 8
          %s1899 = scalar_lea.vmem [#allocation2], %s1898
          %1900 = dma.done %s1896, 128
        $region56: #{tpu_custom_call.1} parent=51 // pred_fallthru
          _
      $region52: #{tpu_custom_call.1} parent=5 // pred_fallthru
        _
    $region6: #{tpu_custom_call.1} parent=1 // loop_footer
      %s19 = sadd.s32 1, %s15
    $region7: #{tpu_custom_call.1} parent=1 // loop_footer_branch
      %14 = sbr.rel target = $region3
    $region8: #{tpu_custom_call.1} parent=1 // loop_exit
      _
    %1901 = vsyncpa [#allocation3], 1
    %s1902 = scalar_lea.sflag [#allocation3], 1
    %1903 = vsyncpa %s1902, 1

</llo_original>
